<compile_context>
chip_gen: v5e
topology: v5e:2x2
jax: 0.10.0
libtpu: 0.0.40
codegen_flags: <defaults>
</compile_context>

<pallas_src>
import math

import jax
import jax.numpy as jnp
import numpy as np
from jax.experimental import pallas as pl
from jax.experimental.pallas import tpu as pltpu


# ----------------------------------------------------------------------------
# Fused encoder-stack kernel factory: grid = (batch_block, layer)
# ----------------------------------------------------------------------------
def _make_encoder_kernel(num_heads):
    def encoder_stack_kernel(x_ref, ct_ref, st_ref,
                             wqkv_ref, bqkv_ref, wd_ref, bd_ref,
                             w1_ref, b1_ref, w2_ref, b2_ref,
                             g1_ref, be1_ref, g2_ref, be2_ref,
                             out_ref, x_scr):
        l = pl.program_id(1)
        n_layers = pl.num_programs(1)

        # Load the embedding activation into the layer-resident scratch once per
        # batch block.
        @pl.when(l == 0)
        def _():
            x_scr[...] = x_ref[...].reshape(x_scr.shape)

        x2 = x_scr[...]                                  # (Bt*S, D) f32, lane-dense
        M, D = x2.shape
        H = num_heads
        dep = D // H
        S = ct_ref.shape[0]
        Bt = M // S
        cdt = jnp.bfloat16

        # --- fused lane-dense QKV projection: (Bt*S, D) @ (D, 5D), f32 accumulation
        qkv = jnp.dot(x2.astype(cdt), wqkv_ref[0],
                      preferred_element_type=jnp.float32) + bqkv_ref[0]
        qa = qkv[:, 0 * D:1 * D].reshape(Bt, S, D)
        qb = qkv[:, 1 * D:2 * D].reshape(Bt, S, D)       # half-swap folded into weights
        ka = qkv[:, 2 * D:3 * D].reshape(Bt, S, D)
        kb = qkv[:, 3 * D:4 * D].reshape(Bt, S, D)
        v = qkv[:, 4 * D:5 * D].reshape(Bt, S, D)

        # --- ROPE in lane-dense layout (raw-angle reference quirk, scale pre-folded)
        ct = ct_ref[...][None]                           # (1, S, D)
        st = st_ref[...][None]
        qr = qa * ct + qb * st                           # (Bt, S, D) f32
        kr = ka * ct + kb * st

        # --- head-major relayout, confined to the attention core only
        def to_heads(t):                                 # (Bt, S, D) -> (H*Bt, S, dep)
            return jnp.stack(
                [t[:, :, h * dep:(h + 1) * dep] for h in range(H)], axis=0
            ).reshape(H * Bt, S, dep)

        qh = to_heads(qr).astype(cdt)
        kh = to_heads(kr).astype(cdt)
        vh = to_heads(v).astype(cdt)

        def bmm(a, b, contract):                         # leading-batch matmul, f32 acc
            return jax.lax.dot_general(
                a, b, dimension_numbers=(contract, ((0,), (0,))),
                preferred_element_type=jnp.float32)

        # --- batched attention over all (head, batch) pairs
        scores = bmm(qh, kh, ((2,), (2,)))               # (H*Bt, S, S) f32
        m = jnp.max(scores, axis=-1, keepdims=True)
        e = jnp.exp(scores - m)
        p = e * pl.reciprocal(jnp.sum(e, axis=-1, keepdims=True), approx=True)
        ctx = bmm(p.astype(cdt), vh, ((2,), (1,)))       # (H*Bt, S, dep) f32

        # --- back to lane-dense, single (Bt*S, D) @ (D, D) output projection
        ctx4 = ctx.reshape(H, Bt, S, dep)
        ctx2 = jnp.concatenate([ctx4[h].reshape(M, dep) for h in range(H)], axis=-1)
        attn = jnp.dot(ctx2.astype(cdt), wd_ref[0],
                       preferred_element_type=jnp.float32) + bd_ref[0]

        def layernorm(y, g, b):
            mu = jnp.mean(y, axis=-1, keepdims=True)
            var = jnp.mean((y - mu) * (y - mu), axis=-1, keepdims=True)
            return (y - mu) * jax.lax.rsqrt(var + 1e-5) * g + b

        x1 = layernorm(x2 + attn, g1_ref[0], be1_ref[0])

        # --- feed-forward (bf16 matmul inputs, f32 accumulation)
        h1 = jnp.maximum(
            jnp.dot(x1.astype(cdt), w1_ref[0], preferred_element_type=jnp.float32)
            + b1_ref[0], 0.0)
        ff = jnp.dot(h1.astype(cdt), w2_ref[0],
                     preferred_element_type=jnp.float32) + b2_ref[0]

        xo = layernorm(x1 + ff, g2_ref[0], be2_ref[0])
        x_scr[...] = xo

        # --- epilogue: fuse the mean-pool over the sequence into the last layer
        @pl.when(l == n_layers - 1)
        def _():
            out_ref[...] = jnp.mean(xo.reshape(Bt, S, D), axis=1, keepdims=True)

    return encoder_stack_kernel


# ----------------------------------------------------------------------------
# JAX glue: ROPE tables, parameter packing, tiling heuristics, wrapper
# ----------------------------------------------------------------------------
def rope_tables(seq_len, dep, num_heads):
    # RotaryEmbedding.forward + the [0::2]/[1::2] slicing in apply_rotary_pos_emb.
    # The reference multiplies by the RAW angles (torch.cos/sin never applied);
    # that quirk is reproduced.  The 1/sqrt(dep) attention scale is folded into the
    # tables as dep**-0.25 (applied to both q and k).  Tables are tiled across
    # heads to full width D so ROPE is a lane-dense elementwise op in the kernel.
    inv_freq = 1.0 / (10000.0 ** (np.arange(0, dep, 2, dtype=np.float32) / dep))
    t = np.arange(seq_len, dtype=np.float32)[:, None]
    freqs = t * inv_freq[None, :]                        # (S, dep/2)
    emb = np.concatenate([freqs, freqs], axis=-1)        # (S, dep)
    cos, sin = emb[:, 0::2], emb[:, 1::2]                # each (S, dep/2)
    s4 = float(dep) ** -0.25
    ct_h = np.concatenate([cos, cos], axis=-1) * s4      # (S, dep) for [even|odd] layout
    st_h = np.concatenate([-sin, sin], axis=-1) * s4
    ct = np.tile(ct_h, (1, num_heads))                   # (S, D)
    st = np.tile(st_h, (1, num_heads))
    return jnp.asarray(ct, jnp.float32), jnp.asarray(st, jnp.float32)


def pack_params(params, num_heads):
    """Stack per-layer weights on a leading layer axis; fold the ROPE channel
    permutation AND half-swap into the packed QKV weight columns; cast weight
    matrices to bf16."""
    layers = params['layers']
    D = layers[0]['wq'].shape[0]
    H = num_heads
    dep = D // H
    # per-head column permutations: a = [even|odd] channels, b = [odd|even]
    pa = np.concatenate([np.arange(0, dep, 2), np.arange(1, dep, 2)])
    pb = np.concatenate([np.arange(1, dep, 2), np.arange(0, dep, 2)])
    perm_a = (np.arange(H)[:, None] * dep + pa[None, :]).reshape(-1)
    perm_b = (np.arange(H)[:, None] * dep + pb[None, :]).reshape(-1)

    acc = {k: [] for k in ('wqkv', 'bqkv', 'wd', 'bd', 'w1', 'b1', 'w2', 'b2',
                           'g1', 'be1', 'g2', 'be2')}
    for lp in layers:
        acc['wqkv'].append(jnp.concatenate(
            [lp['wq'][:, perm_a], lp['wq'][:, perm_b],
             lp['wk'][:, perm_a], lp['wk'][:, perm_b], lp['wv']], axis=1))  # (D, 5D)
        acc['bqkv'].append(jnp.concatenate(
            [lp['bq'][perm_a], lp['bq'][perm_b],
             lp['bk'][perm_a], lp['bk'][perm_b], lp['bv']])[None, :])       # (1, 5D)
        acc['wd'].append(lp['wd'])                       # (D, D) rows already head-grouped
        acc['bd'].append(lp['bd'].reshape(1, D))
        acc['w1'].append(lp['w1'])
        acc['b1'].append(lp['b1'].reshape(1, -1))
        acc['w2'].append(lp['w2'])
        acc['b2'].append(lp['b2'].reshape(1, D))
        acc['g1'].append(lp['g1'].reshape(1, D))
        acc['be1'].append(lp['be1'].reshape(1, D))
        acc['g2'].append(lp['g2'].reshape(1, D))
        acc['be2'].append(lp['be2'].reshape(1, D))

    bf16 = {'wqkv', 'wd', 'w1', 'w2'}
    packed = {k: jnp.stack(v).astype(jnp.bfloat16 if k in bf16 else jnp.float32)
              for k, v in acc.items()}
    packed['emb'] = params['emb']
    packed['wfc'] = params['wfc']
    packed['bfc'] = params['bfc']
    return packed


def _pick_batch_tile(B, S):
    """Largest Bt dividing B s.t. the activation block stays modest and, when B > 1,
    at least 2 parallel grid steps remain (v7x has 2 TensorCores)."""
    best = 1
    for bt in range(1, B + 1):
        if B % bt != 0:
            continue
        if bt * S > 1024:
            continue
        if B > 1 and (B // bt) < 2:
            continue
        best = bt
    return best


def _vmem_limit_bytes():
    # Derive the scoped-VMEM request per chip generation (v7x has only 64 MiB
    # physical VMEM); conservative fallback if the query is unavailable.
    try:
        cap = int(pltpu.get_tpu_info().vmem_capacity_bytes)
    except Exception:
        cap = 64 * 1024 * 1024
    return int(min(cap // 2, 64 * 1024 * 1024))


def forward_pallas(tokens, packed, num_heads):
    x = packed['emb'][tokens].astype(jnp.float32)        # embedding gather (glue), (B, S, D)
    B, S, D = x.shape
    dep = D // num_heads
    L = packed['wqkv'].shape[0]
    Bt = _pick_batch_tile(B, S)
    ct, st = rope_tables(S, dep, num_heads)              # (S, D) each

    def cspec(a):                                        # layer/batch-independent full block
        nd = a.ndim
        return pl.BlockSpec(tuple(a.shape), lambda b, l, _nd=nd: (0,) * _nd)

    def lspec(a):                                        # per-layer block along leading axis
        nd = a.ndim
        return pl.BlockSpec((1,) + tuple(a.shape[1:]),
                            lambda b, l, _nd=nd: (l,) + (0,) * (_nd - 1))

    args = [x, ct, st,
            packed['wqkv'], packed['bqkv'], packed['wd'], packed['bd'],
            packed['w1'], packed['b1'], packed['w2'], packed['b2'],
            packed['g1'], packed['be1'], packed['g2'], packed['be2']]

    in_specs = ([pl.BlockSpec((Bt, S, D), lambda b, l: (b, 0, 0)),
                 cspec(ct), cspec(st)]
                + [lspec(a) for a in args[3:]])
    out_specs = pl.BlockSpec((Bt, 1, D), lambda b, l: (b, 0, 0))

    pooled = pl.pallas_call(
        _make_encoder_kernel(num_heads),
        out_shape=jax.ShapeDtypeStruct((B, 1, D), jnp.float32),
        grid=(B // Bt, L),
        in_specs=in_specs,
        out_specs=out_specs,
        scratch_shapes=[pltpu.VMEM((Bt * S, D), jnp.float32)],
        compiler_params=pltpu.CompilerParams(
            dimension_semantics=("parallel", "arbitrary"),
            vmem_limit_bytes=_vmem_limit_bytes()),
    )(*args)

    pooled = pooled[:, 0, :]                             # (B, D)
    return pooled @ packed['wfc'] + packed['bfc']        # tiny final fc in plain JAX


# ----------------------------------------------------------------------------
# Pure-JAX reference (mirrors the PyTorch module exactly, eval mode, f32)
# ----------------------------------------------------------------------------
def ref_forward(tokens, params, num_heads):
    x = params['emb'][tokens].astype(jnp.float32)
    B, S, D = x.shape
    dep = D // num_heads

    for lp in params['layers']:
        q = x @ lp['wq'] + lp['bq']
        k = x @ lp['wk'] + lp['bk']
        v = x @ lp['wv'] + lp['bv']
        split = lambda t: t.reshape(B, S, num_heads, dep).transpose(0, 2, 1, 3)
        q, k, v = split(q), split(k), split(v)

        inv_freq = 1.0 / (10000.0 ** (jnp.arange(0, dep, 2, dtype=jnp.float32) / dep))
        t = jnp.arange(S, dtype=jnp.float32)[:, None]
        emb = jnp.concatenate([t * inv_freq[None, :]] * 2, axis=-1)[None]  # (1, S, dep)
        cos, sin = emb[..., 0::2], emb[..., 1::2]

        qc, qs = q[..., 0::2], q[..., 1::2]
        kc, ks = k[..., 0::2], k[..., 1::2]
        q_rot = jnp.concatenate([qc * cos - qs * sin, qc * sin + qs * cos], axis=-1)
        k_rot = jnp.concatenate([kc * cos - ks * sin, kc * sin + ks * cos], axis=-1)

        s = jnp.einsum('bhqd,bhkd->bhqk', q_rot, k_rot) / jnp.sqrt(jnp.float32(dep))
        p = jax.nn.softmax(s, axis=-1)
        o = jnp.einsum('bhqk,bhkd->bhqd', p, v).transpose(0, 2, 1, 3).reshape(B, S, D)
        attn = o @ lp['wd'] + lp['bd']

        def ln(y, g, b):
            mu = y.mean(-1, keepdims=True)
            var = ((y - mu) ** 2).mean(-1, keepdims=True)
            return (y - mu) / jnp.sqrt(var + 1e-5) * g + b

        x = ln(x + attn, lp['g1'], lp['be1'])
        ff = jnp.maximum(x @ lp['w1'] + lp['b1'], 0.0) @ lp['w2'] + lp['b2']
        x = ln(x + ff, lp['g2'], lp['be2'])

    pooled = x.mean(axis=1)
    return pooled @ params['wfc'] + params['bfc']


# ----------------------------------------------------------------------------
# Deterministic parameter init (shapes from the module __init__)
# ----------------------------------------------------------------------------
def init_params(key, vocab_size, d_model, num_heads, d_ff, output_size, num_layers):
    keys = jax.random.split(key, 2 + num_layers)
    params = {'emb': jax.random.normal(keys[0], (vocab_size, d_model), jnp.float32)}

    def linear(k, fan_in, fan_out):
        k1, k2 = jax.random.split(k)
        bound = 1.0 / math.sqrt(fan_in)
        w = jax.random.uniform(k1, (fan_in, fan_out), jnp.float32, -bound, bound)
        b = jax.random.uniform(k2, (fan_out,), jnp.float32, -bound, bound)
        return w, b

    layers = []
    for i in range(num_layers):
        lk = jax.random.split(keys[1 + i], 6)
        wq, bq = linear(lk[0], d_model, d_model)
        wk, bk = linear(lk[1], d_model, d_model)
        wv, bv = linear(lk[2], d_model, d_model)
        wd, bd = linear(lk[3], d_model, d_model)
        w1, b1 = linear(lk[4], d_model, d_ff)
        w2, b2 = linear(lk[5], d_ff, d_model)
        layers.append(dict(wq=wq, bq=bq, wk=wk, bk=bk, wv=wv, bv=bv, wd=wd, bd=bd,
                           w1=w1, b1=b1, w2=w2, b2=b2,
                           g1=jnp.ones((d_model,), jnp.float32),
                           be1=jnp.zeros((d_model,), jnp.float32),
                           g2=jnp.ones((d_model,), jnp.float32),
                           be2=jnp.zeros((d_model,), jnp.float32)))
    params['layers'] = layers
    wfc, bfc = linear(keys[1 + num_layers], d_model, output_size)
    params['wfc'], params['bfc'] = wfc, bfc
    return params


# ----------------------------------------------------------------------------
if __name__ == "__main__":
    vocab_size, embed_size, d_model = 32, 32, 32         # embed_size must equal d_model
    num_heads, d_ff, output_size, num_layers = 4, 64, 8, 2
    B, S = 2, 8

    key = jax.random.PRNGKey(0)
    pkey, tkey = jax.random.split(key)
    params = init_params(pkey, vocab_size, d_model, num_heads, d_ff, output_size, num_layers)
    tokens = jax.random.randint(tkey, (B, S), 0, vocab_size, dtype=jnp.int32)

    packed = pack_params(params, num_heads)
    out = forward_pallas(tokens, packed, num_heads)
    out = jax.block_until_ready(out)

    ref = ref_forward(tokens, params, num_heads)
    assert out.shape == (B, output_size)
    err = float(np.max(np.abs(np.asarray(out) - np.asarray(ref))))
    # bf16 MXU inputs with f32 accumulation -> slightly looser tolerance than pure f32.
    assert np.allclose(np.asarray(out), np.asarray(ref), rtol=5e-2, atol=5e-2), \
        f"max diff {err}"

    print("KERNEL_OK")
</pallas_src>

<mosaic_0001>
module attributes {stable_mosaic.version = 11 : i64} {
  func.func @encoder_stack_kernel(%arg0: i32, %arg1: i32, %arg2: memref<1x8x32xf32, #tpu.memory_space<vmem>>, %arg3: memref<8x32xf32, #tpu.memory_space<vmem>>, %arg4: memref<8x32xf32, #tpu.memory_space<vmem>>, %arg5: memref<1x32x160xbf16, #tpu.memory_space<vmem>>, %arg6: memref<1x1x160xf32, #tpu.memory_space<vmem>>, %arg7: memref<1x32x32xbf16, #tpu.memory_space<vmem>>, %arg8: memref<1x1x32xf32, #tpu.memory_space<vmem>>, %arg9: memref<1x32x64xbf16, #tpu.memory_space<vmem>>, %arg10: memref<1x1x64xf32, #tpu.memory_space<vmem>>, %arg11: memref<1x64x32xbf16, #tpu.memory_space<vmem>>, %arg12: memref<1x1x32xf32, #tpu.memory_space<vmem>>, %arg13: memref<1x1x32xf32, #tpu.memory_space<vmem>>, %arg14: memref<1x1x32xf32, #tpu.memory_space<vmem>>, %arg15: memref<1x1x32xf32, #tpu.memory_space<vmem>>, %arg16: memref<1x1x32xf32, #tpu.memory_space<vmem>>, %arg17: memref<1x1x32xf32, #tpu.memory_space<vmem>>, %arg18: memref<8x32xf32, #tpu.memory_space<vmem>>) attributes {dimension_semantics = [#tpu.dimension_semantics<parallel>, #tpu.dimension_semantics<arbitrary>], iteration_bounds = array<i64: 2, 2>, scalar_prefetch = 0 : i64, scratch_operands = 1 : i64, tpu.core_type = #tpu.core_type<tc>, window_params = [{transform_indices = @transform_0, window_bounds = array<i64: 1, 8, 32>}, {pipeline_mode = #tpu.pipeline_mode<synchronous>, transform_indices = @transform_1, window_bounds = array<i64: 8, 32>}, {pipeline_mode = #tpu.pipeline_mode<synchronous>, transform_indices = @transform_2, window_bounds = array<i64: 8, 32>}, {transform_indices = @transform_3, window_bounds = array<i64: 1, 32, 160>}, {transform_indices = @transform_4, window_bounds = array<i64: 1, 1, 160>}, {transform_indices = @transform_5, window_bounds = array<i64: 1, 32, 32>}, {transform_indices = @transform_6, window_bounds = array<i64: 1, 1, 32>}, {transform_indices = @transform_7, window_bounds = array<i64: 1, 32, 64>}, {transform_indices = @transform_8, window_bounds = array<i64: 1, 1, 64>}, {transform_indices = @transform_9, window_bounds = array<i64: 1, 64, 32>}, {transform_indices = @transform_10, window_bounds = array<i64: 1, 1, 32>}, {transform_indices = @transform_11, window_bounds = array<i64: 1, 1, 32>}, {transform_indices = @transform_12, window_bounds = array<i64: 1, 1, 32>}, {transform_indices = @transform_13, window_bounds = array<i64: 1, 1, 32>}, {transform_indices = @transform_14, window_bounds = array<i64: 1, 1, 32>}, {transform_indices = @transform_15, window_bounds = array<i64: 1, 1, 32>}]} {
    %c0_i32 = arith.constant 0 : i32
    %0 = arith.cmpi eq, %arg1, %c0_i32 : i32
    %1 = arith.extui %0 : i1 to i32
    %c0_i32_0 = arith.constant 0 : i32
    %2 = arith.cmpi ne, %1, %c0_i32_0 : i32
    scf.if %2 {
      %c0_63 = arith.constant 0 : index
      %c0_64 = arith.constant 0 : index
      %c0_65 = arith.constant 0 : index
      %180 = vector.load %arg2[%c0_63, %c0_64, %c0_65] : memref<1x8x32xf32, #tpu.memory_space<vmem>>, vector<1x8x32xf32>
      %181 = vector.shape_cast %180 : vector<1x8x32xf32> to vector<8x32xf32>
      %c0_66 = arith.constant 0 : index
      %c0_67 = arith.constant 0 : index
      %182 = vector.load %arg18[%c0_66, %c0_67] : memref<8x32xf32, #tpu.memory_space<vmem>>, vector<8x32xf32>
      tpu.vector_store %arg18[%c0_66, %c0_67], %181 {strides = array<i32>} : memref<8x32xf32, #tpu.memory_space<vmem>>, vector<8x32xf32>,
    } else {
    }
    %c0 = arith.constant 0 : index
    %c0_1 = arith.constant 0 : index
    %3 = vector.load %arg18[%c0, %c0_1] : memref<8x32xf32, #tpu.memory_space<vmem>>, vector<8x32xf32>
    %4 = arith.truncf %3 : vector<8x32xf32> to vector<8x32xbf16>
    %c0_2 = arith.constant 0 : index
    %c0_3 = arith.constant 0 : index
    %c0_4 = arith.constant 0 : index
    %5 = vector.load %arg5[%c0_2, %c0_3, %c0_4] : memref<1x32x160xbf16, #tpu.memory_space<vmem>>, vector<1x32x160xbf16>
    %6 = vector.shape_cast %5 : vector<1x32x160xbf16> to vector<32x160xbf16>
    %cst = arith.constant dense<0.000000e+00> : vector<8x160xf32>
    %7 = tpu.matmul %4, %6, %cst {dimension_numbers = #tpu.dot_dimension_numbers<[1], [0], [0], [1], [0, 0, 1, 1], [], []>} : vector<8x32xbf16>, vector<32x160xbf16>, vector<8x160xf32> -> vector<8x160xf32>
    %c0_5 = arith.constant 0 : index
    %c0_6 = arith.constant 0 : index
    %c0_7 = arith.constant 0 : index
    %8 = vector.load %arg6[%c0_5, %c0_6, %c0_7] : memref<1x1x160xf32, #tpu.memory_space<vmem>>, vector<1x1x160xf32>
    %9 = vector.shape_cast %8 : vector<1x1x160xf32> to vector<1x160xf32>
    %10 = vector.broadcast %9 : vector<1x160xf32> to vector<8x160xf32>
    %11 = arith.addf %7, %10 : vector<8x160xf32>
    %12 = vector.extract_strided_slice %11 {offsets = [0, 0], sizes = [8, 32], strides = [1, 1]} : vector<8x160xf32> to vector<8x32xf32>
    %13 = vector.shape_cast %12 : vector<8x32xf32> to vector<1x8x32xf32>
    %14 = vector.extract_strided_slice %11 {offsets = [0, 32], sizes = [8, 32], strides = [1, 1]} : vector<8x160xf32> to vector<8x32xf32>
    %15 = vector.shape_cast %14 : vector<8x32xf32> to vector<1x8x32xf32>
    %16 = vector.extract_strided_slice %11 {offsets = [0, 64], sizes = [8, 32], strides = [1, 1]} : vector<8x160xf32> to vector<8x32xf32>
    %17 = vector.shape_cast %16 : vector<8x32xf32> to vector<1x8x32xf32>
    %18 = vector.extract_strided_slice %11 {offsets = [0, 96], sizes = [8, 32], strides = [1, 1]} : vector<8x160xf32> to vector<8x32xf32>
    %19 = vector.shape_cast %18 : vector<8x32xf32> to vector<1x8x32xf32>
    %20 = vector.extract_strided_slice %11 {offsets = [0, 128], sizes = [8, 32], strides = [1, 1]} : vector<8x160xf32> to vector<8x32xf32>
    %21 = vector.shape_cast %20 : vector<8x32xf32> to vector<1x8x32xf32>
    %c0_8 = arith.constant 0 : index
    %c0_9 = arith.constant 0 : index
    %22 = vector.load %arg3[%c0_8, %c0_9] : memref<8x32xf32, #tpu.memory_space<vmem>>, vector<8x32xf32>
    %23 = vector.shape_cast %22 : vector<8x32xf32> to vector<1x8x32xf32>
    %c0_10 = arith.constant 0 : index
    %c0_11 = arith.constant 0 : index
    %24 = vector.load %arg4[%c0_10, %c0_11] : memref<8x32xf32, #tpu.memory_space<vmem>>, vector<8x32xf32>
    %25 = vector.shape_cast %24 : vector<8x32xf32> to vector<1x8x32xf32>
    %26 = arith.mulf %13, %23 : vector<1x8x32xf32>
    %27 = arith.mulf %15, %25 : vector<1x8x32xf32>
    %28 = arith.addf %26, %27 : vector<1x8x32xf32>
    %29 = arith.mulf %17, %23 : vector<1x8x32xf32>
    %30 = arith.mulf %19, %25 : vector<1x8x32xf32>
    %31 = arith.addf %29, %30 : vector<1x8x32xf32>
    %32 = vector.extract_strided_slice %28 {offsets = [0, 0, 0], sizes = [1, 8, 8], strides = [1, 1, 1]} : vector<1x8x32xf32> to vector<1x8x8xf32>
    %33 = vector.extract_strided_slice %28 {offsets = [0, 0, 8], sizes = [1, 8, 8], strides = [1, 1, 1]} : vector<1x8x32xf32> to vector<1x8x8xf32>
    %34 = vector.extract_strided_slice %28 {offsets = [0, 0, 16], sizes = [1, 8, 8], strides = [1, 1, 1]} : vector<1x8x32xf32> to vector<1x8x8xf32>
    %35 = vector.extract_strided_slice %28 {offsets = [0, 0, 24], sizes = [1, 8, 8], strides = [1, 1, 1]} : vector<1x8x32xf32> to vector<1x8x8xf32>
    %36 = vector.shape_cast %32 : vector<1x8x8xf32> to vector<1x1x8x8xf32>
    %37 = vector.shape_cast %33 : vector<1x8x8xf32> to vector<1x1x8x8xf32>
    %38 = vector.shape_cast %34 : vector<1x8x8xf32> to vector<1x1x8x8xf32>
    %39 = vector.shape_cast %35 : vector<1x8x8xf32> to vector<1x1x8x8xf32>
    %40 = tpu.concatenate %36, %37, %38, %39 in 0 : vector<1x1x8x8xf32>, vector<1x1x8x8xf32>, vector<1x1x8x8xf32>, vector<1x1x8x8xf32> -> vector<4x1x8x8xf32>
    %41 = vector.shape_cast %40 : vector<4x1x8x8xf32> to vector<4x8x8xf32>
    %42 = arith.truncf %41 : vector<4x8x8xf32> to vector<4x8x8xbf16>
    %43 = vector.extract_strided_slice %31 {offsets = [0, 0, 0], sizes = [1, 8, 8], strides = [1, 1, 1]} : vector<1x8x32xf32> to vector<1x8x8xf32>
    %44 = vector.extract_strided_slice %31 {offsets = [0, 0, 8], sizes = [1, 8, 8], strides = [1, 1, 1]} : vector<1x8x32xf32> to vector<1x8x8xf32>
    %45 = vector.extract_strided_slice %31 {offsets = [0, 0, 16], sizes = [1, 8, 8], strides = [1, 1, 1]} : vector<1x8x32xf32> to vector<1x8x8xf32>
    %46 = vector.extract_strided_slice %31 {offsets = [0, 0, 24], sizes = [1, 8, 8], strides = [1, 1, 1]} : vector<1x8x32xf32> to vector<1x8x8xf32>
    %47 = vector.shape_cast %43 : vector<1x8x8xf32> to vector<1x1x8x8xf32>
    %48 = vector.shape_cast %44 : vector<1x8x8xf32> to vector<1x1x8x8xf32>
    %49 = vector.shape_cast %45 : vector<1x8x8xf32> to vector<1x1x8x8xf32>
    %50 = vector.shape_cast %46 : vector<1x8x8xf32> to vector<1x1x8x8xf32>
    %51 = tpu.concatenate %47, %48, %49, %50 in 0 : vector<1x1x8x8xf32>, vector<1x1x8x8xf32>, vector<1x1x8x8xf32>, vector<1x1x8x8xf32> -> vector<4x1x8x8xf32>
    %52 = vector.shape_cast %51 : vector<4x1x8x8xf32> to vector<4x8x8xf32>
    %53 = arith.truncf %52 : vector<4x8x8xf32> to vector<4x8x8xbf16>
    %54 = vector.extract_strided_slice %21 {offsets = [0, 0, 0], sizes = [1, 8, 8], strides = [1, 1, 1]} : vector<1x8x32xf32> to vector<1x8x8xf32>
    %55 = vector.extract_strided_slice %21 {offsets = [0, 0, 8], sizes = [1, 8, 8], strides = [1, 1, 1]} : vector<1x8x32xf32> to vector<1x8x8xf32>
    %56 = vector.extract_strided_slice %21 {offsets = [0, 0, 16], sizes = [1, 8, 8], strides = [1, 1, 1]} : vector<1x8x32xf32> to vector<1x8x8xf32>
    %57 = vector.extract_strided_slice %21 {offsets = [0, 0, 24], sizes = [1, 8, 8], strides = [1, 1, 1]} : vector<1x8x32xf32> to vector<1x8x8xf32>
    %58 = vector.shape_cast %54 : vector<1x8x8xf32> to vector<1x1x8x8xf32>
    %59 = vector.shape_cast %55 : vector<1x8x8xf32> to vector<1x1x8x8xf32>
    %60 = vector.shape_cast %56 : vector<1x8x8xf32> to vector<1x1x8x8xf32>
    %61 = vector.shape_cast %57 : vector<1x8x8xf32> to vector<1x1x8x8xf32>
    %62 = tpu.concatenate %58, %59, %60, %61 in 0 : vector<1x1x8x8xf32>, vector<1x1x8x8xf32>, vector<1x1x8x8xf32>, vector<1x1x8x8xf32> -> vector<4x1x8x8xf32>
    %63 = vector.shape_cast %62 : vector<4x1x8x8xf32> to vector<4x8x8xf32>
    %64 = arith.truncf %63 : vector<4x8x8xf32> to vector<4x8x8xbf16>
    %cst_12 = arith.constant dense<0.000000e+00> : vector<4x8x8xf32>
    %65 = tpu.matmul %42, %53, %cst_12 {dimension_numbers = #tpu.dot_dimension_numbers<[2], [2], [1], [1], [0, 0, 0, 1, 1, 1], [0], [0]>} : vector<4x8x8xbf16>, vector<4x8x8xbf16>, vector<4x8x8xf32> -> vector<4x8x8xf32>
    %cst_13 = arith.constant dense<0xFF800000> : vector<4x8xf32>
    %66 = vector.multi_reduction <maximumf>, %65, %cst_13 [2] : vector<4x8x8xf32> to vector<4x8xf32>
    %67 = vector.shape_cast %66 : vector<4x8xf32> to vector<4x8x1xf32>
    %68 = vector.broadcast %67 : vector<4x8x1xf32> to vector<4x8x8xf32>
    %69 = arith.subf %65, %68 : vector<4x8x8xf32>
    %70 = math.exp %69 : vector<4x8x8xf32>
    %cst_14 = arith.constant dense<0.000000e+00> : vector<4x8xf32>
    %71 = vector.multi_reduction <add>, %70, %cst_14 [2] : vector<4x8x8xf32> to vector<4x8xf32>
    %72 = vector.shape_cast %71 : vector<4x8xf32> to vector<4x8x1xf32>
    %73 = tpu.reciprocal %72 {approx = true} : vector<4x8x1xf32> -> vector<4x8x1xf32>
    %74 = vector.broadcast %73 : vector<4x8x1xf32> to vector<4x8x8xf32>
    %75 = arith.mulf %70, %74 : vector<4x8x8xf32>
    %76 = arith.truncf %75 : vector<4x8x8xf32> to vector<4x8x8xbf16>
    %cst_15 = arith.constant dense<0.000000e+00> : vector<4x8x8xf32>
    %77 = tpu.matmul %76, %64, %cst_15 {dimension_numbers = #tpu.dot_dimension_numbers<[2], [1], [1], [2], [0, 0, 0, 1, 1, 2], [0], [0]>} : vector<4x8x8xbf16>, vector<4x8x8xbf16>, vector<4x8x8xf32> -> vector<4x8x8xf32>
    %78 = vector.shape_cast %77 : vector<4x8x8xf32> to vector<4x1x8x8xf32>
    %79 = vector.extract_strided_slice %78 {offsets = [0, 0, 0, 0], sizes = [1, 1, 8, 8], strides = [1, 1, 1, 1]} : vector<4x1x8x8xf32> to vector<1x1x8x8xf32>
    %80 = vector.shape_cast %79 : vector<1x1x8x8xf32> to vector<1x8x8xf32>
    %81 = vector.shape_cast %80 : vector<1x8x8xf32> to vector<8x8xf32>
    %82 = vector.extract_strided_slice %78 {offsets = [1, 0, 0, 0], sizes = [1, 1, 8, 8], strides = [1, 1, 1, 1]} : vector<4x1x8x8xf32> to vector<1x1x8x8xf32>
    %83 = vector.shape_cast %82 : vector<1x1x8x8xf32> to vector<1x8x8xf32>
    %84 = vector.shape_cast %83 : vector<1x8x8xf32> to vector<8x8xf32>
    %85 = vector.extract_strided_slice %78 {offsets = [2, 0, 0, 0], sizes = [1, 1, 8, 8], strides = [1, 1, 1, 1]} : vector<4x1x8x8xf32> to vector<1x1x8x8xf32>
    %86 = vector.shape_cast %85 : vector<1x1x8x8xf32> to vector<1x8x8xf32>
    %87 = vector.shape_cast %86 : vector<1x8x8xf32> to vector<8x8xf32>
    %88 = vector.extract_strided_slice %78 {offsets = [3, 0, 0, 0], sizes = [1, 1, 8, 8], strides = [1, 1, 1, 1]} : vector<4x1x8x8xf32> to vector<1x1x8x8xf32>
    %89 = vector.shape_cast %88 : vector<1x1x8x8xf32> to vector<1x8x8xf32>
    %90 = vector.shape_cast %89 : vector<1x8x8xf32> to vector<8x8xf32>
    %91 = tpu.concatenate %81, %84, %87, %90 in 1 : vector<8x8xf32>, vector<8x8xf32>, vector<8x8xf32>, vector<8x8xf32> -> vector<8x32xf32>
    %92 = arith.truncf %91 : vector<8x32xf32> to vector<8x32xbf16>
    %c0_16 = arith.constant 0 : index
    %c0_17 = arith.constant 0 : index
    %c0_18 = arith.constant 0 : index
    %93 = vector.load %arg7[%c0_16, %c0_17, %c0_18] : memref<1x32x32xbf16, #tpu.memory_space<vmem>>, vector<1x32x32xbf16>
    %94 = vector.shape_cast %93 : vector<1x32x32xbf16> to vector<32x32xbf16>
    %cst_19 = arith.constant dense<0.000000e+00> : vector<8x32xf32>
    %95 = tpu.matmul %92, %94, %cst_19 {dimension_numbers = #tpu.dot_dimension_numbers<[1], [0], [0], [1], [0, 0, 1, 1], [], []>} : vector<8x32xbf16>, vector<32x32xbf16>, vector<8x32xf32> -> vector<8x32xf32>
    %c0_20 = arith.constant 0 : index
    %c0_21 = arith.constant 0 : index
    %c0_22 = arith.constant 0 : index
    %96 = vector.load %arg8[%c0_20, %c0_21, %c0_22] : memref<1x1x32xf32, #tpu.memory_space<vmem>>, vector<1x1x32xf32>
    %97 = vector.shape_cast %96 : vector<1x1x32xf32> to vector<1x32xf32>
    %98 = vector.broadcast %97 : vector<1x32xf32> to vector<8x32xf32>
    %99 = arith.addf %95, %98 : vector<8x32xf32>
    %100 = arith.addf %3, %99 : vector<8x32xf32>
    %c0_23 = arith.constant 0 : index
    %c0_24 = arith.constant 0 : index
    %c0_25 = arith.constant 0 : index
    %101 = vector.load %arg13[%c0_23, %c0_24, %c0_25] : memref<1x1x32xf32, #tpu.memory_space<vmem>>, vector<1x1x32xf32>
    %102 = vector.shape_cast %101 : vector<1x1x32xf32> to vector<1x32xf32>
    %c0_26 = arith.constant 0 : index
    %c0_27 = arith.constant 0 : index
    %c0_28 = arith.constant 0 : index
    %103 = vector.load %arg14[%c0_26, %c0_27, %c0_28] : memref<1x1x32xf32, #tpu.memory_space<vmem>>, vector<1x1x32xf32>
    %104 = vector.shape_cast %103 : vector<1x1x32xf32> to vector<1x32xf32>
    %cst_29 = arith.constant dense<0.000000e+00> : vector<8xf32>
    %105 = vector.multi_reduction <add>, %100, %cst_29 [1] : vector<8x32xf32> to vector<8xf32>
    %106 = vector.shape_cast %105 : vector<8xf32> to vector<8x1xf32>
    %cst_30 = arith.constant 3.200000e+01 : f32
    %107 = vector.broadcast %cst_30 : f32 to vector<8x1xf32>
    %108 = arith.divf %106, %107 : vector<8x1xf32>
    %109 = vector.broadcast %108 : vector<8x1xf32> to vector<8x32xf32>
    %110 = arith.subf %100, %109 : vector<8x32xf32>
    %111 = vector.broadcast %108 : vector<8x1xf32> to vector<8x32xf32>
    %112 = arith.subf %100, %111 : vector<8x32xf32>
    %113 = arith.mulf %110, %112 : vector<8x32xf32>
    %cst_31 = arith.constant dense<0.000000e+00> : vector<8xf32>
    %114 = vector.multi_reduction <add>, %113, %cst_31 [1] : vector<8x32xf32> to vector<8xf32>
    %115 = vector.shape_cast %114 : vector<8xf32> to vector<8x1xf32>
    %cst_32 = arith.constant 3.200000e+01 : f32
    %116 = vector.broadcast %cst_32 : f32 to vector<8x1xf32>
    %117 = arith.divf %115, %116 : vector<8x1xf32>
    %118 = vector.broadcast %108 : vector<8x1xf32> to vector<8x32xf32>
    %119 = arith.subf %100, %118 : vector<8x32xf32>
    %cst_33 = arith.constant 9.99999974E-6 : f32
    %120 = vector.broadcast %cst_33 : f32 to vector<8x1xf32>
    %121 = arith.addf %117, %120 : vector<8x1xf32>
    %122 = math.rsqrt %121 : vector<8x1xf32>
    %123 = vector.broadcast %122 : vector<8x1xf32> to vector<8x32xf32>
    %124 = arith.mulf %119, %123 : vector<8x32xf32>
    %125 = vector.broadcast %102 : vector<1x32xf32> to vector<8x32xf32>
    %126 = arith.mulf %124, %125 : vector<8x32xf32>
    %127 = vector.broadcast %104 : vector<1x32xf32> to vector<8x32xf32>
    %128 = arith.addf %126, %127 : vector<8x32xf32>
    %129 = arith.truncf %128 : vector<8x32xf32> to vector<8x32xbf16>
    %c0_34 = arith.constant 0 : index
    %c0_35 = arith.constant 0 : index
    %c0_36 = arith.constant 0 : index
    %130 = vector.load %arg9[%c0_34, %c0_35, %c0_36] : memref<1x32x64xbf16, #tpu.memory_space<vmem>>, vector<1x32x64xbf16>
    %131 = vector.shape_cast %130 : vector<1x32x64xbf16> to vector<32x64xbf16>
    %cst_37 = arith.constant dense<0.000000e+00> : vector<8x64xf32>
    %132 = tpu.matmul %129, %131, %cst_37 {dimension_numbers = #tpu.dot_dimension_numbers<[1], [0], [0], [1], [0, 0, 1, 1], [], []>} : vector<8x32xbf16>, vector<32x64xbf16>, vector<8x64xf32> -> vector<8x64xf32>
    %c0_38 = arith.constant 0 : index
    %c0_39 = arith.constant 0 : index
    %c0_40 = arith.constant 0 : index
    %133 = vector.load %arg10[%c0_38, %c0_39, %c0_40] : memref<1x1x64xf32, #tpu.memory_space<vmem>>, vector<1x1x64xf32>
    %134 = vector.shape_cast %133 : vector<1x1x64xf32> to vector<1x64xf32>
    %135 = vector.broadcast %134 : vector<1x64xf32> to vector<8x64xf32>
    %136 = arith.addf %132, %135 : vector<8x64xf32>
    %cst_41 = arith.constant 0.000000e+00 : f32
    %137 = vector.broadcast %cst_41 : f32 to vector<8x64xf32>
    %138 = arith.maximumf %136, %137 : vector<8x64xf32>
    %139 = arith.truncf %138 : vector<8x64xf32> to vector<8x64xbf16>
    %c0_42 = arith.constant 0 : index
    %c0_43 = arith.constant 0 : index
    %c0_44 = arith.constant 0 : index
    %140 = vector.load %arg11[%c0_42, %c0_43, %c0_44] : memref<1x64x32xbf16, #tpu.memory_space<vmem>>, vector<1x64x32xbf16>
    %141 = vector.shape_cast %140 : vector<1x64x32xbf16> to vector<64x32xbf16>
    %cst_45 = arith.constant dense<0.000000e+00> : vector<8x32xf32>
    %142 = tpu.matmul %139, %141, %cst_45 {dimension_numbers = #tpu.dot_dimension_numbers<[1], [0], [0], [1], [0, 0, 1, 1], [], []>} : vector<8x64xbf16>, vector<64x32xbf16>, vector<8x32xf32> -> vector<8x32xf32>
    %c0_46 = arith.constant 0 : index
    %c0_47 = arith.constant 0 : index
    %c0_48 = arith.constant 0 : index
    %143 = vector.load %arg12[%c0_46, %c0_47, %c0_48] : memref<1x1x32xf32, #tpu.memory_space<vmem>>, vector<1x1x32xf32>
    %144 = vector.shape_cast %143 : vector<1x1x32xf32> to vector<1x32xf32>
    %145 = vector.broadcast %144 : vector<1x32xf32> to vector<8x32xf32>
    %146 = arith.addf %142, %145 : vector<8x32xf32>
    %147 = arith.addf %128, %146 : vector<8x32xf32>
    %c0_49 = arith.constant 0 : index
    %c0_50 = arith.constant 0 : index
    %c0_51 = arith.constant 0 : index
    %148 = vector.load %arg15[%c0_49, %c0_50, %c0_51] : memref<1x1x32xf32, #tpu.memory_space<vmem>>, vector<1x1x32xf32>
    %149 = vector.shape_cast %148 : vector<1x1x32xf32> to vector<1x32xf32>
    %c0_52 = arith.constant 0 : index
    %c0_53 = arith.constant 0 : index
    %c0_54 = arith.constant 0 : index
    %150 = vector.load %arg16[%c0_52, %c0_53, %c0_54] : memref<1x1x32xf32, #tpu.memory_space<vmem>>, vector<1x1x32xf32>
    %151 = vector.shape_cast %150 : vector<1x1x32xf32> to vector<1x32xf32>
    %cst_55 = arith.constant dense<0.000000e+00> : vector<8xf32>
    %152 = vector.multi_reduction <add>, %147, %cst_55 [1] : vector<8x32xf32> to vector<8xf32>
    %153 = vector.shape_cast %152 : vector<8xf32> to vector<8x1xf32>
    %cst_56 = arith.constant 3.200000e+01 : f32
    %154 = vector.broadcast %cst_56 : f32 to vector<8x1xf32>
    %155 = arith.divf %153, %154 : vector<8x1xf32>
    %156 = vector.broadcast %155 : vector<8x1xf32> to vector<8x32xf32>
    %157 = arith.subf %147, %156 : vector<8x32xf32>
    %158 = vector.broadcast %155 : vector<8x1xf32> to vector<8x32xf32>
    %159 = arith.subf %147, %158 : vector<8x32xf32>
    %160 = arith.mulf %157, %159 : vector<8x32xf32>
    %cst_57 = arith.constant dense<0.000000e+00> : vector<8xf32>
    %161 = vector.multi_reduction <add>, %160, %cst_57 [1] : vector<8x32xf32> to vector<8xf32>
    %162 = vector.shape_cast %161 : vector<8xf32> to vector<8x1xf32>
    %cst_58 = arith.constant 3.200000e+01 : f32
    %163 = vector.broadcast %cst_58 : f32 to vector<8x1xf32>
    %164 = arith.divf %162, %163 : vector<8x1xf32>
    %165 = vector.broadcast %155 : vector<8x1xf32> to vector<8x32xf32>
    %166 = arith.subf %147, %165 : vector<8x32xf32>
    %cst_59 = arith.constant 9.99999974E-6 : f32
    %167 = vector.broadcast %cst_59 : f32 to vector<8x1xf32>
    %168 = arith.addf %164, %167 : vector<8x1xf32>
    %169 = math.rsqrt %168 : vector<8x1xf32>
    %170 = vector.broadcast %169 : vector<8x1xf32> to vector<8x32xf32>
    %171 = arith.mulf %166, %170 : vector<8x32xf32>
    %172 = vector.broadcast %149 : vector<1x32xf32> to vector<8x32xf32>
    %173 = arith.mulf %171, %172 : vector<8x32xf32>
    %174 = vector.broadcast %151 : vector<1x32xf32> to vector<8x32xf32>
    %175 = arith.addf %173, %174 : vector<8x32xf32>
    %c0_60 = arith.constant 0 : index
    %c0_61 = arith.constant 0 : index
    %176 = vector.load %arg18[%c0_60, %c0_61] : memref<8x32xf32, #tpu.memory_space<vmem>>, vector<8x32xf32>
    tpu.vector_store %arg18[%c0_60, %c0_61], %175 {strides = array<i32>} : memref<8x32xf32, #tpu.memory_space<vmem>>, vector<8x32xf32>,
    %c1_i32 = arith.constant 1 : i32
    %177 = arith.cmpi eq, %arg1, %c1_i32 : i32
    %178 = arith.extui %177 : i1 to i32
    %c0_i32_62 = arith.constant 0 : i32
    %179 = arith.cmpi ne, %178, %c0_i32_62 : i32
    scf.if %179 {
      %180 = vector.shape_cast %175 : vector<8x32xf32> to vector<1x8x32xf32>
      %cst_63 = arith.constant dense<0.000000e+00> : vector<1x32xf32>
      %181 = vector.multi_reduction <add>, %180, %cst_63 [1] : vector<1x8x32xf32> to vector<1x32xf32>
      %182 = vector.shape_cast %181 : vector<1x32xf32> to vector<1x1x32xf32>
      %cst_64 = arith.constant 8.000000e+00 : f32
      %183 = vector.broadcast %cst_64 : f32 to vector<1x1x32xf32>
      %184 = arith.divf %182, %183 : vector<1x1x32xf32>
      %c0_65 = arith.constant 0 : index
      %c0_66 = arith.constant 0 : index
      %c0_67 = arith.constant 0 : index
      %185 = vector.load %arg17[%c0_65, %c0_66, %c0_67] : memref<1x1x32xf32, #tpu.memory_space<vmem>>, vector<1x1x32xf32>
      tpu.vector_store %arg17[%c0_65, %c0_66, %c0_67], %184 {strides = array<i32>} : memref<1x1x32xf32, #tpu.memory_space<vmem>>, vector<1x1x32xf32>,
    } else {
    }
    return
  }
  func.func @transform_0(%arg0: i32, %arg1: i32) -> (i32, i32, i32) {
    %c0_i32 = arith.constant 0 : i32
    %c0_i32_0 = arith.constant 0 : i32
    %c0_i32_1 = arith.constant 0 : i32
    return %arg0, %c0_i32, %c0_i32_0 : i32, i32, i32
  }
  func.func @transform_1(%arg0: i32, %arg1: i32) -> (i32, i32) {
    %c0_i32 = arith.constant 0 : i32
    %c0_i32_0 = arith.constant 0 : i32
    %c0_i32_1 = arith.constant 0 : i32
    return %c0_i32, %c0_i32_0 : i32, i32
  }
  func.func @transform_2(%arg0: i32, %arg1: i32) -> (i32, i32) {
    %c0_i32 = arith.constant 0 : i32
    %c0_i32_0 = arith.constant 0 : i32
    %c0_i32_1 = arith.constant 0 : i32
    return %c0_i32, %c0_i32_0 : i32, i32
  }
  func.func @transform_3(%arg0: i32, %arg1: i32) -> (i32, i32, i32) {
    %c0_i32 = arith.constant 0 : i32
    %c0_i32_0 = arith.constant 0 : i32
    %c0_i32_1 = arith.constant 0 : i32
    return %arg1, %c0_i32, %c0_i32_0 : i32, i32, i32
  }
  func.func @transform_4(%arg0: i32, %arg1: i32) -> (i32, i32, i32) {
    %c0_i32 = arith.constant 0 : i32
    %c0_i32_0 = arith.constant 0 : i32
    %c0_i32_1 = arith.constant 0 : i32
    return %arg1, %c0_i32, %c0_i32_0 : i32, i32, i32
  }
  func.func @transform_5(%arg0: i32, %arg1: i32) -> (i32, i32, i32) {
    %c0_i32 = arith.constant 0 : i32
    %c0_i32_0 = arith.constant 0 : i32
    %c0_i32_1 = arith.constant 0 : i32
    return %arg1, %c0_i32, %c0_i32_0 : i32, i32, i32
  }
  func.func @transform_6(%arg0: i32, %arg1: i32) -> (i32, i32, i32) {
    %c0_i32 = arith.constant 0 : i32
    %c0_i32_0 = arith.constant 0 : i32
    %c0_i32_1 = arith.constant 0 : i32
    return %arg1, %c0_i32, %c0_i32_0 : i32, i32, i32
  }
  func.func @transform_7(%arg0: i32, %arg1: i32) -> (i32, i32, i32) {
    %c0_i32 = arith.constant 0 : i32
    %c0_i32_0 = arith.constant 0 : i32
    %c0_i32_1 = arith.constant 0 : i32
    return %arg1, %c0_i32, %c0_i32_0 : i32, i32, i32
  }
  func.func @transform_8(%arg0: i32, %arg1: i32) -> (i32, i32, i32) {
    %c0_i32 = arith.constant 0 : i32
    %c0_i32_0 = arith.constant 0 : i32
    %c0_i32_1 = arith.constant 0 : i32
    return %arg1, %c0_i32, %c0_i32_0 : i32, i32, i32
  }
  func.func @transform_9(%arg0: i32, %arg1: i32) -> (i32, i32, i32) {
    %c0_i32 = arith.constant 0 : i32
    %c0_i32_0 = arith.constant 0 : i32
    %c0_i32_1 = arith.constant 0 : i32
    return %arg1, %c0_i32, %c0_i32_0 : i32, i32, i32
  }
  func.func @transform_10(%arg0: i32, %arg1: i32) -> (i32, i32, i32) {
    %c0_i32 = arith.constant 0 : i32
    %c0_i32_0 = arith.constant 0 : i32
    %c0_i32_1 = arith.constant 0 : i32
    return %arg1, %c0_i32, %c0_i32_0 : i32, i32, i32
  }
  func.func @transform_11(%arg0: i32, %arg1: i32) -> (i32, i32, i32) {
    %c0_i32 = arith.constant 0 : i32
    %c0_i32_0 = arith.constant 0 : i32
    %c0_i32_1 = arith.constant 0 : i32
    return %arg1, %c0_i32, %c0_i32_0 : i32, i32, i32
  }
  func.func @transform_12(%arg0: i32, %arg1: i32) -> (i32, i32, i32) {
    %c0_i32 = arith.constant 0 : i32
    %c0_i32_0 = arith.constant 0 : i32
    %c0_i32_1 = arith.constant 0 : i32
    return %arg1, %c0_i32, %c0_i32_0 : i32, i32, i32
  }
  func.func @transform_13(%arg0: i32, %arg1: i32) -> (i32, i32, i32) {
    %c0_i32 = arith.constant 0 : i32
    %c0_i32_0 = arith.constant 0 : i32
    %c0_i32_1 = arith.constant 0 : i32
    return %arg1, %c0_i32, %c0_i32_0 : i32, i32, i32
  }
  func.func @transform_14(%arg0: i32, %arg1: i32) -> (i32, i32, i32) {
    %c0_i32 = arith.constant 0 : i32
    %c0_i32_0 = arith.constant 0 : i32
    %c0_i32_1 = arith.constant 0 : i32
    return %arg1, %c0_i32, %c0_i32_0 : i32, i32, i32
  }
  func.func @transform_15(%arg0: i32, %arg1: i32) -> (i32, i32, i32) {
    %c0_i32 = arith.constant 0 : i32
    %c0_i32_0 = arith.constant 0 : i32
    %c0_i32_1 = arith.constant 0 : i32
    return %arg0, %c0_i32, %c0_i32_0 : i32, i32, i32
  }
}

</mosaic_0001>

<llo_original>
// kernel: tpu_custom_call.1
$region0: #{tpu_custom_call.1}
  #allocation0 [shape = 'u32[]', space=smem, size = 0x4, offset = 0x4, fixed_abs, tag = 'smem constant byte address 0x4 - core index']
  #allocation1 [shape = 'u32[72,128]{1,0:T(1,128)}', space=vmem, size = 0x9000, scoped, tag = 'internal scratch']
  #allocation2 [shape = 'f32[8,32]{1,0:T(8,128)}', space=vmem, size = 0x1000, scoped, tag = 'scratch operand']
  %s0 = inlined_call_operand.hbm [shape: f32[2,8,32], index: 0, kind: input, shape index: {}]
  %s1 = inlined_call_operand.hbm [shape: f32[8,32], index: 1, kind: input, shape index: {}]
  %s2 = inlined_call_operand.hbm [shape: f32[8,32], index: 2, kind: input, shape index: {}]
  %s3 = inlined_call_operand.vmem [shape: bf16[2,32,160], index: 3, kind: input, shape index: {}]
  %s4 = inlined_call_operand.hbm [shape: f32[2,1,160], index: 4, kind: input, shape index: {}]
  %s5 = inlined_call_operand.vmem [shape: bf16[2,32,32], index: 5, kind: input, shape index: {}]
  %s6 = inlined_call_operand.vmem [shape: f32[2,1,32], index: 6, kind: input, shape index: {}]
  %s7 = inlined_call_operand.hbm [shape: bf16[2,32,64], index: 7, kind: input, shape index: {}]
  %s8 = inlined_call_operand.vmem [shape: f32[2,1,64], index: 8, kind: input, shape index: {}]
  %s9 = inlined_call_operand.vmem [shape: bf16[2,64,32], index: 9, kind: input, shape index: {}]
  %s10 = inlined_call_operand.vmem [shape: f32[2,1,32], index: 10, kind: input, shape index: {}]
  %s11 = inlined_call_operand.vmem [shape: f32[2,1,32], index: 11, kind: input, shape index: {}]
  %s12 = inlined_call_operand.vmem [shape: f32[2,1,32], index: 12, kind: input, shape index: {}]
  %s13 = inlined_call_operand.hbm [shape: f32[2,1,32], index: 13, kind: input, shape index: {}]
  %s14 = inlined_call_operand.vmem [shape: f32[2,1,32], index: 14, kind: input, shape index: {}]
  %s15 = inlined_call_operand.hbm [shape: f32[2,1,32], index: 15, kind: output, shape index: {}]
  %s16 = sld [smem:[#allocation0]]
  $region125: #{tpu_custom_call.1} parent=0
    _
  %s18 = ssub.s32 1, %s16
  %s19 = scalar_select 0, %s18, %s16
  $region1: #{tpu_custom_call.1} parent=0
    #allocation3 [shape = 'u8[8192]{0}', space=vmem, size = 0x2000, scoped, tag = 'input window, operand 0']
    #allocation4 [shape = 's32[2]{0}', space=sflag, size = 0x8, scoped, tag = 'scoped memory for tpu_custom_call.1']
    #allocation5 [shape = 's32[2]{0}', space=sflag, size = 0x8, scoped, tag = 'scoped memory for tpu_custom_call.1']
    #allocation6 [shape = 'u8[4096]{0}', space=vmem, size = 0x1000, scoped, tag = 'input window, operand 1, single buffered']
    #allocation7 [shape = 's32[1]{0}', space=sflag, size = 0x4, scoped, tag = 'scoped memory for tpu_custom_call.1']
    #allocation8 [shape = 'u8[4096]{0}', space=vmem, size = 0x1000, scoped, tag = 'input window, operand 2, single buffered']
    #allocation9 [shape = 'u8[2048]{0}', space=vmem, size = 0x800, scoped, tag = 'input window, operand 4']
    #allocation10 [shape = 's32[2]{0}', space=sflag, size = 0x8, scoped, tag = 'scoped memory for tpu_custom_call.1']
    #allocation11 [shape = 'u8[16384]{0}', space=vmem, size = 0x4000, scoped, tag = 'input window, operand 7']
    #allocation12 [shape = 'u8[1024]{0}', space=vmem, size = 0x400, scoped, tag = 'input window, operand 13']
    #allocation13 [shape = 's32[2]{0}', space=sflag, size = 0x8, scoped, tag = 'scoped memory for tpu_custom_call.1']
    #allocation14 [shape = 'u8[1024]{0}', space=vmem, size = 0x400, scoped, tag = 'output window, operand 0']
    %20 = vsyncpa [#allocation4], 0
    %s21 = scalar_lea.sflag [#allocation4], 1
    %22 = vsyncpa %s21, 0
    %23 = vsyncpa [#allocation7], 0
    %24 = vsyncpa [#allocation10], 0
    %s25 = scalar_lea.sflag [#allocation10], 1
    %26 = vsyncpa %s25, 0
    %27 = vsyncpa [#allocation13], 0
    %s28 = scalar_lea.sflag [#allocation13], 1
    %29 = vsyncpa %s28, 0
    %30 = vsyncpa [#allocation5], 0
    %s31 = scalar_lea.sflag [#allocation5], 1
    %32 = vsyncpa %s31, 0
    loop: start=0, step=1, limit=6
    $region2: #{tpu_custom_call.1} parent=1 // loop_pre_header
      _
    $region3: #{tpu_custom_call.1} parent=1 // loop_header
      %s34 = sphi 0, %s38
      %p35 = scmp.ge.s32.totalorder %s34, 6
      %s41 = sphi 0, %s53
      %s42 = sphi 0, %s49
      %s43 = sphi 0, %s41
      %s44 = sphi 0, %s42
      %s45 = sphi 0, %s43
      %s46 = sphi 0, %s44
      %s56 = sphi 0, %s58
      %s59 = sphi 0, %s56
      %s60 = sphi 0, %s59
      %s76 = sphi 0, %s60
      %s80 = sphi 0, %s80
      %s82 = sphi 0, %s80
      %s83 = sphi 0, %s82
      %s97 = sphi 0, %s83
      %s101 = sphi 0, %s101
      %s103 = sphi 0, %s101
      %s104 = sphi 0, %s103
      %s118 = sphi 0, %s104
      %s124 = sphi 0, %s126
      %s127 = sphi 0, %s124
      %s128 = sphi 0, %s127
      %s144 = sphi 0, %s128
      %s150 = sphi 0, %s152
      %s153 = sphi 0, %s150
      %s154 = sphi 0, %s153
      %s170 = sphi 0, %s154
      %s176 = sphi 0, %s178
      %s179 = sphi 0, %s176
      %s180 = sphi 0, %s179
      %s196 = sphi 0, %s180
      %s202 = sphi 0, %s204
      %s205 = sphi 0, %s202
      %s206 = sphi 0, %s205
      %s222 = sphi 0, %s206
      %s228 = sphi 0, %s230
      %s231 = sphi 0, %s228
      %s232 = sphi 0, %s231
      %s248 = sphi 0, %s232
      %s254 = sphi 0, %s256
      %s257 = sphi 0, %s254
      %s258 = sphi 0, %s257
      %s274 = sphi 0, %s258
      %s280 = sphi 0, %s282
      %s283 = sphi 0, %s280
      %s284 = sphi 0, %s283
      %s300 = sphi 0, %s284
      %s306 = sphi 0, %s308
      %s309 = sphi 0, %s306
      %s310 = sphi 0, %s309
      %s326 = sphi 0, %s310
      %s332 = sphi 0, %s334
      %s335 = sphi 0, %s332
      %s336 = sphi 0, %s335
      %s352 = sphi 0, %s336
      %s358 = sphi 0, %s360
      %s361 = sphi 0, %s358
      %s362 = sphi 0, %s361
      %s378 = sphi 0, %s362
      %s384 = sphi 0, %s386
      %s387 = sphi 0, %s384
      %s388 = sphi 0, %s387
      %s404 = sphi 0, %s388
      %s410 = sphi 0, %s412
      %s413 = sphi 0, %s410
      %s414 = sphi 0, %s413
      %s430 = sphi 0, %s414
      %s436 = sphi 0, %s438
      %s439 = sphi 0, %s436
      %s440 = sphi 0, %s439
      %s456 = sphi 0, %s440
    $region4: #{tpu_custom_call.1} parent=1 // loop_header_branch
      %37 = sbr.rel (%p35) target = $region8
    $region5: #{tpu_custom_call.1} parent=1 // loop_body
      %s39 = ssub.s32 %s34, 1
      %s40 = ssub.s32 %s34, 2
      %s47 = sadd.s32 1, %s42
      %p48 = scmp.ge.s32.totalorder %s47, 2
      %s49 = scalar_select %p48, 0, %s47
      %s50 = sadd.s32 1, %s41
      %s51 = scalar_select %p48, %s50, %s41
      %p52 = scmp.ge.s32.totalorder %s51, 2
      %s53 = scalar_select %p52, 0, %s51
      %s54 = ssub.s32 %s41, %s53
      %p55 = scmp.eq.s32.totalorder %s54, 0
      %s57 = sadd.s32 %s56, 1
      %s58 = scalar_select %p55, %s56, %s57
      %p61 = pneg %p55
      %p62 = scmp.eq.s32.totalorder %s34, 3
      %p63 = por %p61, %p62
      %p64 = scmp.ne.s32.totalorder %s56, %s59
      %p65 = scmp.eq.s32.totalorder %s34, 0
      %p66 = por %p64, %p65
      %p67 = scmp.ne.s32.totalorder %s56, %s59
      %p68 = scmp.eq.s32.totalorder %s39, 3
      %p69 = por %p67, %p68
      %p70 = scmp.ne.s32.totalorder %s59, %s60
      %p71 = scmp.eq.s32.totalorder %s39, 0
      %p72 = por %p70, %p71
      %p73 = scmp.ne.s32.totalorder %s59, %s60
      %p74 = scmp.eq.s32.totalorder %s40, 3
      %p75 = por %p73, %p74
      %p77 = scmp.ne.s32.totalorder %s60, %s76
      %p78 = scmp.eq.s32.totalorder %s40, 0
      %p79 = por %p77, %p78
      %s81 = sadd.s32 %s80, 1
      %p84 = scmp.eq.s32.totalorder %s34, 3
      %p85 = scmp.ne.s32.totalorder %s80, %s82
      %p86 = scmp.eq.s32.totalorder %s34, 0
      %p87 = por %p85, %p86
      %p88 = scmp.ne.s32.totalorder %s80, %s82
      %p89 = scmp.eq.s32.totalorder %s39, 3
      %p90 = por %p88, %p89
      %p91 = scmp.ne.s32.totalorder %s82, %s83
      %p92 = scmp.eq.s32.totalorder %s39, 0
      %p93 = por %p91, %p92
      %p94 = scmp.ne.s32.totalorder %s82, %s83
      %p95 = scmp.eq.s32.totalorder %s40, 3
      %p96 = por %p94, %p95
      %p98 = scmp.ne.s32.totalorder %s83, %s97
      %p99 = scmp.eq.s32.totalorder %s40, 0
      %p100 = por %p98, %p99
      %s102 = sadd.s32 %s101, 1
      %p105 = scmp.eq.s32.totalorder %s34, 3
      %p106 = scmp.ne.s32.totalorder %s101, %s103
      %p107 = scmp.eq.s32.totalorder %s34, 0
      %p108 = por %p106, %p107
      %p109 = scmp.ne.s32.totalorder %s101, %s103
      %p110 = scmp.eq.s32.totalorder %s39, 3
      %p111 = por %p109, %p110
      %p112 = scmp.ne.s32.totalorder %s103, %s104
      %p113 = scmp.eq.s32.totalorder %s39, 0
      %p114 = por %p112, %p113
      %p115 = scmp.ne.s32.totalorder %s103, %s104
      %p116 = scmp.eq.s32.totalorder %s40, 3
      %p117 = por %p115, %p116
      %p119 = scmp.ne.s32.totalorder %s104, %s118
      %p120 = scmp.eq.s32.totalorder %s40, 0
      %p121 = por %p119, %p120
      %s122 = ssub.s32 %s42, %s49
      %p123 = scmp.eq.s32.totalorder %s122, 0
      %s125 = sadd.s32 %s124, 1
      %s126 = scalar_select %p123, %s124, %s125
      %p129 = pneg %p123
      %p130 = scmp.eq.s32.totalorder %s34, 3
      %p131 = por %p129, %p130
      %p132 = scmp.ne.s32.totalorder %s124, %s127
      %p133 = scmp.eq.s32.totalorder %s34, 0
      %p134 = por %p132, %p133
      %p135 = scmp.ne.s32.totalorder %s124, %s127
      %p136 = scmp.eq.s32.totalorder %s39, 3
      %p137 = por %p135, %p136
      %p138 = scmp.ne.s32.totalorder %s127, %s128
      %p139 = scmp.eq.s32.totalorder %s39, 0
      %p140 = por %p138, %p139
      %p141 = scmp.ne.s32.totalorder %s127, %s128
      %p142 = scmp.eq.s32.totalorder %s40, 3
      %p143 = por %p141, %p142
      %p145 = scmp.ne.s32.totalorder %s128, %s144
      %p146 = scmp.eq.s32.totalorder %s40, 0
      %p147 = por %p145, %p146
      %s148 = ssub.s32 %s42, %s49
      %p149 = scmp.eq.s32.totalorder %s148, 0
      %s151 = sadd.s32 %s150, 1
      %s152 = scalar_select %p149, %s150, %s151
      %p155 = pneg %p149
      %p156 = scmp.eq.s32.totalorder %s34, 3
      %p157 = por %p155, %p156
      %p158 = scmp.ne.s32.totalorder %s150, %s153
      %p159 = scmp.eq.s32.totalorder %s34, 0
      %p160 = por %p158, %p159
      %p161 = scmp.ne.s32.totalorder %s150, %s153
      %p162 = scmp.eq.s32.totalorder %s39, 3
      %p163 = por %p161, %p162
      %p164 = scmp.ne.s32.totalorder %s153, %s154
      %p165 = scmp.eq.s32.totalorder %s39, 0
      %p166 = por %p164, %p165
      %p167 = scmp.ne.s32.totalorder %s153, %s154
      %p168 = scmp.eq.s32.totalorder %s40, 3
      %p169 = por %p167, %p168
      %p171 = scmp.ne.s32.totalorder %s154, %s170
      %p172 = scmp.eq.s32.totalorder %s40, 0
      %p173 = por %p171, %p172
      %s174 = ssub.s32 %s42, %s49
      %p175 = scmp.eq.s32.totalorder %s174, 0
      %s177 = sadd.s32 %s176, 1
      %s178 = scalar_select %p175, %s176, %s177
      %p181 = pneg %p175
      %p182 = scmp.eq.s32.totalorder %s34, 3
      %p183 = por %p181, %p182
      %p184 = scmp.ne.s32.totalorder %s176, %s179
      %p185 = scmp.eq.s32.totalorder %s34, 0
      %p186 = por %p184, %p185
      %p187 = scmp.ne.s32.totalorder %s176, %s179
      %p188 = scmp.eq.s32.totalorder %s39, 3
      %p189 = por %p187, %p188
      %p190 = scmp.ne.s32.totalorder %s179, %s180
      %p191 = scmp.eq.s32.totalorder %s39, 0
      %p192 = por %p190, %p191
      %p193 = scmp.ne.s32.totalorder %s179, %s180
      %p194 = scmp.eq.s32.totalorder %s40, 3
      %p195 = por %p193, %p194
      %p197 = scmp.ne.s32.totalorder %s180, %s196
      %p198 = scmp.eq.s32.totalorder %s40, 0
      %p199 = por %p197, %p198
      %s200 = ssub.s32 %s42, %s49
      %p201 = scmp.eq.s32.totalorder %s200, 0
      %s203 = sadd.s32 %s202, 1
      %s204 = scalar_select %p201, %s202, %s203
      %p207 = pneg %p201
      %p208 = scmp.eq.s32.totalorder %s34, 3
      %p209 = por %p207, %p208
      %p210 = scmp.ne.s32.totalorder %s202, %s205
      %p211 = scmp.eq.s32.totalorder %s34, 0
      %p212 = por %p210, %p211
      %p213 = scmp.ne.s32.totalorder %s202, %s205
      %p214 = scmp.eq.s32.totalorder %s39, 3
      %p215 = por %p213, %p214
      %p216 = scmp.ne.s32.totalorder %s205, %s206
      %p217 = scmp.eq.s32.totalorder %s39, 0
      %p218 = por %p216, %p217
      %p219 = scmp.ne.s32.totalorder %s205, %s206
      %p220 = scmp.eq.s32.totalorder %s40, 3
      %p221 = por %p219, %p220
      %p223 = scmp.ne.s32.totalorder %s206, %s222
      %p224 = scmp.eq.s32.totalorder %s40, 0
      %p225 = por %p223, %p224
      %s226 = ssub.s32 %s42, %s49
      %p227 = scmp.eq.s32.totalorder %s226, 0
      %s229 = sadd.s32 %s228, 1
      %s230 = scalar_select %p227, %s228, %s229
      %p233 = pneg %p227
      %p234 = scmp.eq.s32.totalorder %s34, 3
      %p235 = por %p233, %p234
      %p236 = scmp.ne.s32.totalorder %s228, %s231
      %p237 = scmp.eq.s32.totalorder %s34, 0
      %p238 = por %p236, %p237
      %p239 = scmp.ne.s32.totalorder %s228, %s231
      %p240 = scmp.eq.s32.totalorder %s39, 3
      %p241 = por %p239, %p240
      %p242 = scmp.ne.s32.totalorder %s231, %s232
      %p243 = scmp.eq.s32.totalorder %s39, 0
      %p244 = por %p242, %p243
      %p245 = scmp.ne.s32.totalorder %s231, %s232
      %p246 = scmp.eq.s32.totalorder %s40, 3
      %p247 = por %p245, %p246
      %p249 = scmp.ne.s32.totalorder %s232, %s248
      %p250 = scmp.eq.s32.totalorder %s40, 0
      %p251 = por %p249, %p250
      %s252 = ssub.s32 %s42, %s49
      %p253 = scmp.eq.s32.totalorder %s252, 0
      %s255 = sadd.s32 %s254, 1
      %s256 = scalar_select %p253, %s254, %s255
      %p259 = pneg %p253
      %p260 = scmp.eq.s32.totalorder %s34, 3
      %p261 = por %p259, %p260
      %p262 = scmp.ne.s32.totalorder %s254, %s257
      %p263 = scmp.eq.s32.totalorder %s34, 0
      %p264 = por %p262, %p263
      %p265 = scmp.ne.s32.totalorder %s254, %s257
      %p266 = scmp.eq.s32.totalorder %s39, 3
      %p267 = por %p265, %p266
      %p268 = scmp.ne.s32.totalorder %s257, %s258
      %p269 = scmp.eq.s32.totalorder %s39, 0
      %p270 = por %p268, %p269
      %p271 = scmp.ne.s32.totalorder %s257, %s258
      %p272 = scmp.eq.s32.totalorder %s40, 3
      %p273 = por %p271, %p272
      %p275 = scmp.ne.s32.totalorder %s258, %s274
      %p276 = scmp.eq.s32.totalorder %s40, 0
      %p277 = por %p275, %p276
      %s278 = ssub.s32 %s42, %s49
      %p279 = scmp.eq.s32.totalorder %s278, 0
      %s281 = sadd.s32 %s280, 1
      %s282 = scalar_select %p279, %s280, %s281
      %p285 = pneg %p279
      %p286 = scmp.eq.s32.totalorder %s34, 3
      %p287 = por %p285, %p286
      %p288 = scmp.ne.s32.totalorder %s280, %s283
      %p289 = scmp.eq.s32.totalorder %s34, 0
      %p290 = por %p288, %p289
      %p291 = scmp.ne.s32.totalorder %s280, %s283
      %p292 = scmp.eq.s32.totalorder %s39, 3
      %p293 = por %p291, %p292
      %p294 = scmp.ne.s32.totalorder %s283, %s284
      %p295 = scmp.eq.s32.totalorder %s39, 0
      %p296 = por %p294, %p295
      %p297 = scmp.ne.s32.totalorder %s283, %s284
      %p298 = scmp.eq.s32.totalorder %s40, 3
      %p299 = por %p297, %p298
      %p301 = scmp.ne.s32.totalorder %s284, %s300
      %p302 = scmp.eq.s32.totalorder %s40, 0
      %p303 = por %p301, %p302
      %s304 = ssub.s32 %s42, %s49
      %p305 = scmp.eq.s32.totalorder %s304, 0
      %s307 = sadd.s32 %s306, 1
      %s308 = scalar_select %p305, %s306, %s307
      %p311 = pneg %p305
      %p312 = scmp.eq.s32.totalorder %s34, 3
      %p313 = por %p311, %p312
      %p314 = scmp.ne.s32.totalorder %s306, %s309
      %p315 = scmp.eq.s32.totalorder %s34, 0
      %p316 = por %p314, %p315
      %p317 = scmp.ne.s32.totalorder %s306, %s309
      %p318 = scmp.eq.s32.totalorder %s39, 3
      %p319 = por %p317, %p318
      %p320 = scmp.ne.s32.totalorder %s309, %s310
      %p321 = scmp.eq.s32.totalorder %s39, 0
      %p322 = por %p320, %p321
      %p323 = scmp.ne.s32.totalorder %s309, %s310
      %p324 = scmp.eq.s32.totalorder %s40, 3
      %p325 = por %p323, %p324
      %p327 = scmp.ne.s32.totalorder %s310, %s326
      %p328 = scmp.eq.s32.totalorder %s40, 0
      %p329 = por %p327, %p328
      %s330 = ssub.s32 %s42, %s49
      %p331 = scmp.eq.s32.totalorder %s330, 0
      %s333 = sadd.s32 %s332, 1
      %s334 = scalar_select %p331, %s332, %s333
      %p337 = pneg %p331
      %p338 = scmp.eq.s32.totalorder %s34, 3
      %p339 = por %p337, %p338
      %p340 = scmp.ne.s32.totalorder %s332, %s335
      %p341 = scmp.eq.s32.totalorder %s34, 0
      %p342 = por %p340, %p341
      %p343 = scmp.ne.s32.totalorder %s332, %s335
      %p344 = scmp.eq.s32.totalorder %s39, 3
      %p345 = por %p343, %p344
      %p346 = scmp.ne.s32.totalorder %s335, %s336
      %p347 = scmp.eq.s32.totalorder %s39, 0
      %p348 = por %p346, %p347
      %p349 = scmp.ne.s32.totalorder %s335, %s336
      %p350 = scmp.eq.s32.totalorder %s40, 3
      %p351 = por %p349, %p350
      %p353 = scmp.ne.s32.totalorder %s336, %s352
      %p354 = scmp.eq.s32.totalorder %s40, 0
      %p355 = por %p353, %p354
      %s356 = ssub.s32 %s42, %s49
      %p357 = scmp.eq.s32.totalorder %s356, 0
      %s359 = sadd.s32 %s358, 1
      %s360 = scalar_select %p357, %s358, %s359
      %p363 = pneg %p357
      %p364 = scmp.eq.s32.totalorder %s34, 3
      %p365 = por %p363, %p364
      %p366 = scmp.ne.s32.totalorder %s358, %s361
      %p367 = scmp.eq.s32.totalorder %s34, 0
      %p368 = por %p366, %p367
      %p369 = scmp.ne.s32.totalorder %s358, %s361
      %p370 = scmp.eq.s32.totalorder %s39, 3
      %p371 = por %p369, %p370
      %p372 = scmp.ne.s32.totalorder %s361, %s362
      %p373 = scmp.eq.s32.totalorder %s39, 0
      %p374 = por %p372, %p373
      %p375 = scmp.ne.s32.totalorder %s361, %s362
      %p376 = scmp.eq.s32.totalorder %s40, 3
      %p377 = por %p375, %p376
      %p379 = scmp.ne.s32.totalorder %s362, %s378
      %p380 = scmp.eq.s32.totalorder %s40, 0
      %p381 = por %p379, %p380
      %s382 = ssub.s32 %s42, %s49
      %p383 = scmp.eq.s32.totalorder %s382, 0
      %s385 = sadd.s32 %s384, 1
      %s386 = scalar_select %p383, %s384, %s385
      %p389 = pneg %p383
      %p390 = scmp.eq.s32.totalorder %s34, 3
      %p391 = por %p389, %p390
      %p392 = scmp.ne.s32.totalorder %s384, %s387
      %p393 = scmp.eq.s32.totalorder %s34, 0
      %p394 = por %p392, %p393
      %p395 = scmp.ne.s32.totalorder %s384, %s387
      %p396 = scmp.eq.s32.totalorder %s39, 3
      %p397 = por %p395, %p396
      %p398 = scmp.ne.s32.totalorder %s387, %s388
      %p399 = scmp.eq.s32.totalorder %s39, 0
      %p400 = por %p398, %p399
      %p401 = scmp.ne.s32.totalorder %s387, %s388
      %p402 = scmp.eq.s32.totalorder %s40, 3
      %p403 = por %p401, %p402
      %p405 = scmp.ne.s32.totalorder %s388, %s404
      %p406 = scmp.eq.s32.totalorder %s40, 0
      %p407 = por %p405, %p406
      %s408 = ssub.s32 %s42, %s49
      %p409 = scmp.eq.s32.totalorder %s408, 0
      %s411 = sadd.s32 %s410, 1
      %s412 = scalar_select %p409, %s410, %s411
      %p415 = pneg %p409
      %p416 = scmp.eq.s32.totalorder %s34, 3
      %p417 = por %p415, %p416
      %p418 = scmp.ne.s32.totalorder %s410, %s413
      %p419 = scmp.eq.s32.totalorder %s34, 0
      %p420 = por %p418, %p419
      %p421 = scmp.ne.s32.totalorder %s410, %s413
      %p422 = scmp.eq.s32.totalorder %s39, 3
      %p423 = por %p421, %p422
      %p424 = scmp.ne.s32.totalorder %s413, %s414
      %p425 = scmp.eq.s32.totalorder %s39, 0
      %p426 = por %p424, %p425
      %p427 = scmp.ne.s32.totalorder %s413, %s414
      %p428 = scmp.eq.s32.totalorder %s40, 3
      %p429 = por %p427, %p428
      %p431 = scmp.ne.s32.totalorder %s414, %s430
      %p432 = scmp.eq.s32.totalorder %s40, 0
      %p433 = por %p431, %p432
      %s434 = ssub.s32 %s41, %s53
      %p435 = scmp.eq.s32.totalorder %s434, 0
      %s437 = sadd.s32 %s436, 1
      %s438 = scalar_select %p435, %s436, %s437
      %p441 = pneg %p435
      %p442 = scmp.eq.s32.totalorder %s34, 3
      %p443 = por %p441, %p442
      %p444 = scmp.ne.s32.totalorder %s436, %s439
      %p445 = scmp.eq.s32.totalorder %s34, 0
      %p446 = por %p444, %p445
      %p447 = scmp.ne.s32.totalorder %s436, %s439
      %p448 = scmp.eq.s32.totalorder %s39, 3
      %p449 = por %p447, %p448
      %p450 = scmp.ne.s32.totalorder %s439, %s440
      %p451 = scmp.eq.s32.totalorder %s39, 0
      %p452 = por %p450, %p451
      %p453 = scmp.ne.s32.totalorder %s439, %s440
      %p454 = scmp.eq.s32.totalorder %s40, 3
      %p455 = por %p453, %p454
      %p457 = scmp.ne.s32.totalorder %s440, %s456
      %p458 = scmp.eq.s32.totalorder %s40, 0
      %p459 = por %p457, %p458
      %p460 = scmp.le.s32.totalorder 1, %s34
      %p461 = scmp.lt.s32.totalorder %s34, 5
      %p462 = pnand %p460, %p461
      %p463 = pneg %p462
      // Predicated region
      $region9: #{tpu_custom_call.1} parent=5 // pred_check
        _
      $region10: #{tpu_custom_call.1} parent=5 // pred_check_branch
        %465 = sbr.rel (%p462) target = $region12
      $region11: #{tpu_custom_call.1} parent=5 // pred_region
        %s466 = ssub.s32 %s34, 1
        // Predicated region
        $region13: #{tpu_custom_call.1} parent=11 // pred_check
          %p467 = pneg %p93
        $region14: #{tpu_custom_call.1} parent=11 // pred_check_branch
          %469 = sbr.rel (%p467) target = $region16
        $region15: #{tpu_custom_call.1} parent=11 // pred_region
          %471 = vsyncadd [#allocation7], 0
          %s473 = sshll.u32 %s1, 4
          %s474 = int_to_ptr.hbm [resolvable:$true] %s473
          %s475 = sshll.u32 [#allocation6], 4
          %s476 = int_to_ptr.vmem [resolvable:$true] %s475
          %478 = dma.hbm_to_vmem [thread:$0]  %s474, 128, %s476, [#allocation7]
        $region16: #{tpu_custom_call.1} parent=11 // pred_fallthru
          _
        // Predicated region
        $region17: #{tpu_custom_call.1} parent=11 // pred_check
          %p479 = pneg %p114
        $region18: #{tpu_custom_call.1} parent=11 // pred_check_branch
          %481 = sbr.rel (%p479) target = $region20
        $region19: #{tpu_custom_call.1} parent=11 // pred_region
          %483 = vsyncadd [#allocation7], 0
          %s485 = sshll.u32 %s2, 4
          %s486 = int_to_ptr.hbm [resolvable:$true] %s485
          %s487 = sshll.u32 [#allocation8], 4
          %s488 = int_to_ptr.vmem [resolvable:$true] %s487
          %490 = dma.hbm_to_vmem [thread:$0]  %s486, 128, %s488, [#allocation7]
        $region20: #{tpu_custom_call.1} parent=11 // pred_fallthru
          _
      $region12: #{tpu_custom_call.1} parent=5 // pred_fallthru
        _
      %p491 = scmp.lt.s32.totalorder %s34, 4
      // Predicated region
      $region21: #{tpu_custom_call.1} parent=5 // pred_check
        %p492 = pneg %p491
      $region22: #{tpu_custom_call.1} parent=5 // pred_check_branch
        %494 = sbr.rel (%p492) target = $region24
      $region23: #{tpu_custom_call.1} parent=5 // pred_region
        // Predicated region
        $region25: #{tpu_custom_call.1} parent=23 // pred_check
          %p495 = pneg %p66
        $region26: #{tpu_custom_call.1} parent=23 // pred_check_branch
          %497 = sbr.rel (%p495) target = $region28
        $region27: #{tpu_custom_call.1} parent=23 // pred_region
          %s498 = sand.u32 %s56, 1
          %s499 = scalar_lea.sflag [#allocation4], %s498
          %s500 = sand.u32 %s56, 1
          %s501 = smul.addr %s500, 8
          %s502 = scalar_lea.vmem [#allocation3], %s501
          %504 = vsyncadd %s499, 0
          %s505 = smul.addr %s41, 8
          %s506 = scalar_lea.hbm %s0, %s505
          %s508 = sshll.u32 %s506, 4
          %s509 = int_to_ptr.hbm [resolvable:$true] %s508
          %s510 = sshll.u32 %s502, 4
          %s511 = int_to_ptr.vmem [resolvable:$true] %s510
          %513 = dma.hbm_to_vmem [thread:$0]  %s509, 128, %s511, %s499
        $region28: #{tpu_custom_call.1} parent=23 // pred_fallthru
          _
        // Predicated region
        $region29: #{tpu_custom_call.1} parent=23 // pred_check
          %p514 = pneg %p134
        $region30: #{tpu_custom_call.1} parent=23 // pred_check_branch
          %516 = sbr.rel (%p514) target = $region32
        $region31: #{tpu_custom_call.1} parent=23 // pred_region
          %p517 = scmp.lt.s32.totalorder %s42, 1
          %s518 = scalar_select %p517, %s42, 1
          %s519 = smul.addr %s518, 8
          %s520 = smul.addr %s519, 4
          %s521 = scalar_lea.vmem %s3, %s520
        $region32: #{tpu_custom_call.1} parent=23 // pred_fallthru
          _
        // Predicated region
        $region33: #{tpu_custom_call.1} parent=23 // pred_check
          %p522 = pneg %p160
        $region34: #{tpu_custom_call.1} parent=23 // pred_check_branch
          %524 = sbr.rel (%p522) target = $region36
        $region35: #{tpu_custom_call.1} parent=23 // pred_region
          %s525 = sand.u32 %s34, 1
          %s526 = scalar_lea.sflag [#allocation10], %s525
          %s527 = sand.u32 %s150, 1
          %s528 = smul.addr %s527, 2
          %s529 = scalar_lea.vmem [#allocation9], %s528
          %531 = vsyncadd %s526, 0
          %s532 = smul.addr %s42, 2
          %s533 = scalar_lea.hbm %s4, %s532
          %s535 = sshll.u32 %s533, 4
          %s536 = int_to_ptr.hbm [resolvable:$true] %s535
          %s537 = sshll.u32 %s529, 4
          %s538 = int_to_ptr.vmem [resolvable:$true] %s537
          %540 = dma.hbm_to_vmem [thread:$0]  %s536, 32, %s538, %s526
        $region36: #{tpu_custom_call.1} parent=23 // pred_fallthru
          _
        // Predicated region
        $region37: #{tpu_custom_call.1} parent=23 // pred_check
          %p541 = pneg %p186
        $region38: #{tpu_custom_call.1} parent=23 // pred_check_branch
          %543 = sbr.rel (%p541) target = $region40
        $region39: #{tpu_custom_call.1} parent=23 // pred_region
          %p544 = scmp.lt.s32.totalorder %s42, 1
          %s545 = scalar_select %p544, %s42, 1
          %s546 = smul.addr %s545, 4
          %s547 = smul.addr %s546, 4
          %s548 = scalar_lea.vmem %s5, %s547
        $region40: #{tpu_custom_call.1} parent=23 // pred_fallthru
          _
        // Predicated region
        $region41: #{tpu_custom_call.1} parent=23 // pred_check
          %p549 = pneg %p212
        $region42: #{tpu_custom_call.1} parent=23 // pred_check_branch
          %551 = sbr.rel (%p549) target = $region44
        $region43: #{tpu_custom_call.1} parent=23 // pred_region
          %p552 = scmp.lt.s32.totalorder %s42, 1
          %s553 = scalar_select %p552, %s42, 1
          %s554 = scalar_lea.vmem %s6, %s553
        $region44: #{tpu_custom_call.1} parent=23 // pred_fallthru
          _
        // Predicated region
        $region45: #{tpu_custom_call.1} parent=23 // pred_check
          %p555 = pneg %p238
        $region46: #{tpu_custom_call.1} parent=23 // pred_check_branch
          %557 = sbr.rel (%p555) target = $region48
        $region47: #{tpu_custom_call.1} parent=23 // pred_region
          %s558 = sand.u32 %s34, 1
          %s559 = scalar_lea.sflag [#allocation10], %s558
          %s560 = sand.u32 %s228, 1
          %s561 = smul.addr %s560, 16
          %s562 = scalar_lea.vmem [#allocation11], %s561
          %564 = vsyncadd %s559, 0
          %s565 = smul.addr %s42, 4
          %s566 = smul.addr %s565, 4
          %s567 = scalar_lea.hbm %s7, %s566
          %s568 = sshll.u32 %s567, 4
          %s569 = int_to_ptr.hbm [resolvable:$true] %s568
          %s570 = sshll.u32 %s562, 4
          %s571 = int_to_ptr.vmem [resolvable:$true] %s570
          %576 = dma.hbm_to_vmem [thread:$0]  %s569, 256, %s571, %s559, 64, 64, 4
        $region48: #{tpu_custom_call.1} parent=23 // pred_fallthru
          _
        // Predicated region
        $region49: #{tpu_custom_call.1} parent=23 // pred_check
          %p577 = pneg %p264
        $region50: #{tpu_custom_call.1} parent=23 // pred_check_branch
          %579 = sbr.rel (%p577) target = $region52
        $region51: #{tpu_custom_call.1} parent=23 // pred_region
          %p580 = scmp.lt.s32.totalorder %s42, 1
          %s581 = scalar_select %p580, %s42, 1
          %s582 = scalar_lea.vmem %s8, %s581
        $region52: #{tpu_custom_call.1} parent=23 // pred_fallthru
          _
        // Predicated region
        $region53: #{tpu_custom_call.1} parent=23 // pred_check
          %p583 = pneg %p290
        $region54: #{tpu_custom_call.1} parent=23 // pred_check_branch
          %585 = sbr.rel (%p583) target = $region56
        $region55: #{tpu_custom_call.1} parent=23 // pred_region
          %p586 = scmp.lt.s32.totalorder %s42, 1
          %s587 = scalar_select %p586, %s42, 1
          %s588 = smul.addr %s587, 8
          %s589 = smul.addr %s588, 4
          %s590 = scalar_lea.vmem %s9, %s589
        $region56: #{tpu_custom_call.1} parent=23 // pred_fallthru
          _
        // Predicated region
        $region57: #{tpu_custom_call.1} parent=23 // pred_check
          %p591 = pneg %p316
        $region58: #{tpu_custom_call.1} parent=23 // pred_check_branch
          %593 = sbr.rel (%p591) target = $region60
        $region59: #{tpu_custom_call.1} parent=23 // pred_region
          %p594 = scmp.lt.s32.totalorder %s42, 1
          %s595 = scalar_select %p594, %s42, 1
          %s596 = scalar_lea.vmem %s10, %s595
        $region60: #{tpu_custom_call.1} parent=23 // pred_fallthru
          _
        // Predicated region
        $region61: #{tpu_custom_call.1} parent=23 // pred_check
          %p597 = pneg %p342
        $region62: #{tpu_custom_call.1} parent=23 // pred_check_branch
          %599 = sbr.rel (%p597) target = $region64
        $region63: #{tpu_custom_call.1} parent=23 // pred_region
          %p600 = scmp.lt.s32.totalorder %s42, 1
          %s601 = scalar_select %p600, %s42, 1
          %s602 = scalar_lea.vmem %s11, %s601
        $region64: #{tpu_custom_call.1} parent=23 // pred_fallthru
          _
        // Predicated region
        $region65: #{tpu_custom_call.1} parent=23 // pred_check
          %p603 = pneg %p368
        $region66: #{tpu_custom_call.1} parent=23 // pred_check_branch
          %605 = sbr.rel (%p603) target = $region68
        $region67: #{tpu_custom_call.1} parent=23 // pred_region
          %p606 = scmp.lt.s32.totalorder %s42, 1
          %s607 = scalar_select %p606, %s42, 1
          %s608 = scalar_lea.vmem %s12, %s607
        $region68: #{tpu_custom_call.1} parent=23 // pred_fallthru
          _
        // Predicated region
        $region69: #{tpu_custom_call.1} parent=23 // pred_check
          %p609 = pneg %p394
        $region70: #{tpu_custom_call.1} parent=23 // pred_check_branch
          %611 = sbr.rel (%p609) target = $region72
        $region71: #{tpu_custom_call.1} parent=23 // pred_region
          %s612 = sand.u32 %s384, 1
          %s613 = scalar_lea.sflag [#allocation13], %s612
          %s614 = sand.u32 %s384, 1
          %s615 = scalar_lea.vmem [#allocation12], %s614
          %617 = vsyncadd %s613, 0
          %s618 = scalar_lea.hbm %s13, %s42
          %s620 = sshll.u32 %s618, 4
          %s621 = int_to_ptr.hbm [resolvable:$true] %s620
          %s622 = sshll.u32 %s615, 4
          %s623 = int_to_ptr.vmem [resolvable:$true] %s622
          %625 = dma.hbm_to_vmem [thread:$0]  %s621, 16, %s623, %s613
        $region72: #{tpu_custom_call.1} parent=23 // pred_fallthru
          _
        // Predicated region
        $region73: #{tpu_custom_call.1} parent=23 // pred_check
          %p626 = pneg %p420
        $region74: #{tpu_custom_call.1} parent=23 // pred_check_branch
          %628 = sbr.rel (%p626) target = $region76
        $region75: #{tpu_custom_call.1} parent=23 // pred_region
          %p629 = scmp.lt.s32.totalorder %s42, 1
          %s630 = scalar_select %p629, %s42, 1
          %s631 = scalar_lea.vmem %s14, %s630
        $region76: #{tpu_custom_call.1} parent=23 // pred_fallthru
          _
      $region24: #{tpu_custom_call.1} parent=5 // pred_fallthru
        _
      %p632 = scmp.le.s32.totalorder 1, %s34
      %p633 = scmp.lt.s32.totalorder %s34, 5
      %p634 = pnand %p632, %p633
      %p635 = pneg %p634
      // Predicated region
      $region77: #{tpu_custom_call.1} parent=5 // pred_check
        _
      $region78: #{tpu_custom_call.1} parent=5 // pred_check_branch
        %637 = sbr.rel (%p634) target = $region80
      $region79: #{tpu_custom_call.1} parent=5 // pred_region
        %s638 = ssub.s32 %s34, 1
        %s639 = sand.u32 %s59, 1
        %s640 = scalar_lea.sflag [#allocation4], %s639
        %s641 = sand.u32 %s59, 1
        %s642 = smul.addr %s641, 8
        %s643 = scalar_lea.vmem [#allocation3], %s642
        // Predicated region
        $region81: #{tpu_custom_call.1} parent=79 // pred_check
          %p644 = pneg %p72
        $region82: #{tpu_custom_call.1} parent=79 // pred_check_branch
          %646 = sbr.rel (%p644) target = $region84
        $region83: #{tpu_custom_call.1} parent=79 // pred_region
          %648 = dma.done %s640, 128
        $region84: #{tpu_custom_call.1} parent=79 // pred_fallthru
          _
        // Predicated region
        $region85: #{tpu_custom_call.1} parent=79 // pred_check
          %p649 = pneg %p93
        $region86: #{tpu_custom_call.1} parent=79 // pred_check_branch
          %651 = sbr.rel (%p649) target = $region88
        $region87: #{tpu_custom_call.1} parent=79 // pred_region
          %653 = dma.done [#allocation7], 128
        $region88: #{tpu_custom_call.1} parent=79 // pred_fallthru
          _
        // Predicated region
        $region89: #{tpu_custom_call.1} parent=79 // pred_check
          %p654 = pneg %p114
        $region90: #{tpu_custom_call.1} parent=79 // pred_check_branch
          %656 = sbr.rel (%p654) target = $region92
        $region91: #{tpu_custom_call.1} parent=79 // pred_region
          %658 = dma.done [#allocation7], 128
        $region92: #{tpu_custom_call.1} parent=79 // pred_fallthru
          _
        %s659 = sand.u32 %s39, 1
        %s660 = scalar_lea.sflag [#allocation10], %s659
        %s661 = sand.u32 %s153, 1
        %s662 = smul.addr %s661, 2
        %s663 = scalar_lea.vmem [#allocation9], %s662
        // Predicated region
        $region93: #{tpu_custom_call.1} parent=79 // pred_check
          %p664 = pneg %p166
        $region94: #{tpu_custom_call.1} parent=79 // pred_check_branch
          %666 = sbr.rel (%p664) target = $region96
        $region95: #{tpu_custom_call.1} parent=79 // pred_region
          %668 = dma.done %s660, 32
        $region96: #{tpu_custom_call.1} parent=79 // pred_fallthru
          _
        %s669 = sand.u32 %s39, 1
        %s670 = scalar_lea.sflag [#allocation10], %s669
        %s671 = sand.u32 %s231, 1
        %s672 = smul.addr %s671, 16
        %s673 = scalar_lea.vmem [#allocation11], %s672
        // Predicated region
        $region97: #{tpu_custom_call.1} parent=79 // pred_check
          %p674 = pneg %p244
        $region98: #{tpu_custom_call.1} parent=79 // pred_check_branch
          %676 = sbr.rel (%p674) target = $region100
        $region99: #{tpu_custom_call.1} parent=79 // pred_region
          %678 = dma.done %s670, 256
        $region100: #{tpu_custom_call.1} parent=79 // pred_fallthru
          _
        %s679 = sand.u32 %s387, 1
        %s680 = scalar_lea.sflag [#allocation13], %s679
        %s681 = sand.u32 %s387, 1
        %s682 = scalar_lea.vmem [#allocation12], %s681
        // Predicated region
        $region101: #{tpu_custom_call.1} parent=79 // pred_check
          %p683 = pneg %p400
        $region102: #{tpu_custom_call.1} parent=79 // pred_check_branch
          %685 = sbr.rel (%p683) target = $region104
        $region103: #{tpu_custom_call.1} parent=79 // pred_region
          %687 = dma.done %s680, 16
        $region104: #{tpu_custom_call.1} parent=79 // pred_fallthru
          _
        %s688 = sand.u32 %s59, 1
        %s689 = scalar_lea.sflag [#allocation4], %s688
        %s690 = sand.u32 %s59, 1
        %s691 = smul.addr %s690, 8
        %s692 = scalar_lea.vmem [#allocation3], %s691
        %p693 = pneg %p72
        %p694 = pneg %p69
        %p695 = pneg %p93
        %p696 = pneg %p90
        %p697 = pneg %p114
        %p698 = pneg %p111
        %p699 = scmp.lt.s32.totalorder %s44, 1
        %s700 = scalar_select %p699, %s44, 1
        %s701 = smul.addr %s700, 8
        %s702 = smul.addr %s701, 4
        %s703 = scalar_lea.vmem %s3, %s702
        %p704 = pneg %p140
        %p705 = pneg %p137
        %s706 = sand.u32 %s39, 1
        %s707 = scalar_lea.sflag [#allocation10], %s706
        %s708 = sand.u32 %s153, 1
        %s709 = smul.addr %s708, 2
        %s710 = scalar_lea.vmem [#allocation9], %s709
        %p711 = pneg %p166
        %p712 = pneg %p163
        %p713 = scmp.lt.s32.totalorder %s44, 1
        %s714 = scalar_select %p713, %s44, 1
        %s715 = smul.addr %s714, 4
        %s716 = smul.addr %s715, 4
        %s717 = scalar_lea.vmem %s5, %s716
        %p718 = pneg %p192
        %p719 = pneg %p189
        %p720 = scmp.lt.s32.totalorder %s44, 1
        %s721 = scalar_select %p720, %s44, 1
        %s722 = scalar_lea.vmem %s6, %s721
        %p723 = pneg %p218
        %p724 = pneg %p215
        %s725 = sand.u32 %s39, 1
        %s726 = scalar_lea.sflag [#allocation10], %s725
        %s727 = sand.u32 %s231, 1
        %s728 = smul.addr %s727, 16
        %s729 = scalar_lea.vmem [#allocation11], %s728
        %p730 = pneg %p244
        %p731 = pneg %p241
        %p732 = scmp.lt.s32.totalorder %s44, 1
        %s733 = scalar_select %p732, %s44, 1
        %s734 = scalar_lea.vmem %s8, %s733
        %p735 = pneg %p270
        %p736 = pneg %p267
        %p737 = scmp.lt.s32.totalorder %s44, 1
        %s738 = scalar_select %p737, %s44, 1
        %s739 = smul.addr %s738, 8
        %s740 = smul.addr %s739, 4
        %s741 = scalar_lea.vmem %s9, %s740
        %p742 = pneg %p296
        %p743 = pneg %p293
        %p744 = scmp.lt.s32.totalorder %s44, 1
        %s745 = scalar_select %p744, %s44, 1
        %s746 = scalar_lea.vmem %s10, %s745
        %p747 = pneg %p322
        %p748 = pneg %p319
        %p749 = scmp.lt.s32.totalorder %s44, 1
        %s750 = scalar_select %p749, %s44, 1
        %s751 = scalar_lea.vmem %s11, %s750
        %p752 = pneg %p348
        %p753 = pneg %p345
        %p754 = scmp.lt.s32.totalorder %s44, 1
        %s755 = scalar_select %p754, %s44, 1
        %s756 = scalar_lea.vmem %s12, %s755
        %p757 = pneg %p374
        %p758 = pneg %p371
        %s759 = sand.u32 %s387, 1
        %s760 = scalar_lea.sflag [#allocation13], %s759
        %s761 = sand.u32 %s387, 1
        %s762 = scalar_lea.vmem [#allocation12], %s761
        %p763 = pneg %p400
        %p764 = pneg %p397
        %p765 = scmp.lt.s32.totalorder %s44, 1
        %s766 = scalar_select %p765, %s44, 1
        %s767 = scalar_lea.vmem %s14, %s766
        %p768 = pneg %p426
        %p769 = pneg %p423
        %p770 = pneg %p452
        %p771 = pneg %p449
        %s772 = sand.u32 %s439, 1
        %s773 = scalar_lea.sflag [#allocation5], %s772
        %s774 = sand.u32 %s439, 1
        %s775 = scalar_lea.vmem [#allocation14], %s774
        %p776 = scmp.lt.s32.totalorder %s44, 1
        %s777 = scalar_select %p776, %s44, 1
        %s778 = smul.addr %s777, 8
        %s779 = smul.addr %s778, 4
        %s780 = scalar_lea.vmem %s3, %s779
        %p781 = scmp.lt.s32.totalorder %s44, 1
        %s782 = scalar_select %p781, %s44, 1
        %s783 = smul.addr %s782, 4
        %s784 = smul.addr %s783, 4
        %s785 = scalar_lea.vmem %s5, %s784
        %p786 = scmp.lt.s32.totalorder %s44, 1
        %s787 = scalar_select %p786, %s44, 1
        %s788 = scalar_lea.vmem %s6, %s787
        %p789 = scmp.lt.s32.totalorder %s44, 1
        %s790 = scalar_select %p789, %s44, 1
        %s791 = scalar_lea.vmem %s8, %s790
        %p792 = scmp.lt.s32.totalorder %s44, 1
        %s793 = scalar_select %p792, %s44, 1
        %s794 = smul.addr %s793, 8
        %s795 = smul.addr %s794, 4
        %s796 = scalar_lea.vmem %s9, %s795
        %p797 = scmp.lt.s32.totalorder %s44, 1
        %s798 = scalar_select %p797, %s44, 1
        %s799 = scalar_lea.vmem %s10, %s798
        %p800 = scmp.lt.s32.totalorder %s44, 1
        %s801 = scalar_select %p800, %s44, 1
        %s802 = scalar_lea.vmem %s11, %s801
        %p803 = scmp.lt.s32.totalorder %s44, 1
        %s804 = scalar_select %p803, %s44, 1
        %s805 = scalar_lea.vmem %s12, %s804
        %p806 = scmp.lt.s32.totalorder %s44, 1
        %s807 = scalar_select %p806, %s44, 1
        %s808 = scalar_lea.vmem %s14, %s807
        %p810 = scmp.eq.s32.totalorder %s44, 0
        // Predicated region
        $region105: #{tpu_custom_call.1} parent=79 // pred_check
          %p811 = pneg %p810
        $region106: #{tpu_custom_call.1} parent=79 // pred_check_branch
          %813 = sbr.rel (%p811) target = $region108
        $region107: #{tpu_custom_call.1} parent=79 // pred_region
          %v814 = vld [vmem:[%s643] sm:$0xff]
          %vm815 = vcmask 261120
          %816 = vst.msk [vmem:[#allocation2] sm:$0xff] %vm815, %v814
        $region108: #{tpu_custom_call.1} parent=79 // pred_fallthru
          _
        %v817 = vld [vmem:[#allocation2] sm:$0xff]
        %v818 = vpack.c.bf16 %v817, %v817
        %v819 = vld [vmem:[%s780] sm:$0xff]
        %v820 = vld [vmem:[%s780 + $0x8] sm:$0xff]
        %v821 = vld [vmem:[%s780 + $0x10] sm:$0xff]
        %v822 = vld [vmem:[%s780 + $0x18] sm:$0xff]
        %v823 = vld [vmem:[%s663] sm:$0x3]
        %v825 = vperm.slane %v823, 0
        %v826 = vperm.slane %v823, 1
        %v833 = vunpack.c.l.b16 %v819
        %v834 = vunpack.c.h.b16 %v819
        %v835 = vunpack.c.l.b16 %v820
        %v836 = vunpack.c.h.b16 %v820
        %v837 = vunpack.c.l.b16 %v821
        %v838 = vunpack.c.h.b16 %v821
        %v839 = vunpack.c.l.b16 %v822
        %v840 = vunpack.c.h.b16 %v822
        %v841 = vpack.c.b16 %v835, %v833
        %v842 = vpack.c.b16 %v836, %v834
        %v843 = vpack.c.b16 %v839, %v837
        %v844 = vpack.c.b16 %v840, %v838
        %vm849 = vcmask 261120
        %v851 = vsel %vm849, %v818, 0
        %853 = vmatpush.bf16.msra.mxu0 0
        %854 = vmatpush.bf16.msra.mxu0 0
        %855 = vmatpush.bf16.msra.mxu0 0
        %856 = vmatpush.bf16.msra.mxu0 0
        %857 = vmatpush.bf16.msra.mxu0 0
        %858 = vmatpush.bf16.msra.mxu0 0
        %859 = vmatpush.bf16.msra.mxu0 %v843
        %860 = vmatpush.bf16.msra.mxu0 %v841
        %861 = vmatmul.bf16.gmra.mxu0 %v851
        %v862 = vpop.f32.mrf.mxu0
        %v863 = vadd.f32 %v825, %v862
        %v864 = vpop.f32.mrf.mxu0
        %865 = vdwg.mxu0
        %866 = vmatpush.bf16.msra.mxu0 0
        %867 = vmatpush.bf16.msra.mxu0 0
        %868 = vmatpush.bf16.msra.mxu0 0
        %869 = vmatpush.bf16.msra.mxu0 0
        %870 = vmatpush.bf16.msra.mxu0 0
        %871 = vmatpush.bf16.msra.mxu0 0
        %872 = vmatpush.bf16.msra.mxu0 %v844
        %873 = vmatpush.bf16.msra.mxu0 %v842
        %874 = vmatmul.bf16.gmra.mxu0 %v851
        %v875 = vpop.f32.mrf.mxu0
        %v876 = vadd.f32 %v826, %v875
        %v877 = vpop.f32.mrf.mxu0
        %878 = vdwg.mxu0
        %v879 = vld [vmem:[#allocation6] sm:$0xff]
        %v880 = vld [vmem:[#allocation8] sm:$0xff]
        %v881 = vmul.f32 %v863, %v879
        %883 = vrot.lane.b32.xlu0 %v880, 32
        %v884 = vpop.permute.xlu0 %883
        %v886 = vmul.f32 %v863, %v884
        %888 = vrot.lane.b32.xlu0 %v886, 96
        %v889 = vpop.permute.xlu0 %888
        %v891 = vadd.f32 %v881, %v889
        %893 = vrot.lane.b32.xlu0 %v879, 64
        %v894 = vpop.permute.xlu0 %893
        %v896 = vmul.f32 %v863, %v894
        %897 = vrot.lane.b32.xlu0 %v880, 96
        %v898 = vpop.permute.xlu0 %897
        %v900 = vmul.f32 %v863, %v898
        %902 = vrot.lane.b32.xlu0 %v900, 96
        %v903 = vpop.permute.xlu0 %902
        %v905 = vadd.f32 %v896, %v903
        %907 = vrot.lane.b32.xlu0 %v891, 120
        %v908 = vpop.permute.xlu0 %907
        %910 = vrot.lane.b32.xlu0 %v891, 112
        %v911 = vpop.permute.xlu0 %910
        %913 = vrot.lane.b32.xlu0 %v891, 104
        %v914 = vpop.permute.xlu0 %913
        %v916 = vpack.c.bf16 %v891, %v891
        %v917 = vpack.c.bf16 %v908, %v908
        %v918 = vpack.c.bf16 %v911, %v911
        %v919 = vpack.c.bf16 %v914, %v914
        %921 = vrot.lane.b32.xlu0 %v905, 120
        %v922 = vpop.permute.xlu0 %921
        %924 = vrot.lane.b32.xlu0 %v905, 112
        %v925 = vpop.permute.xlu0 %924
        %927 = vrot.lane.b32.xlu0 %v905, 104
        %v928 = vpop.permute.xlu0 %927
        %v930 = vpack.c.bf16 %v905, %v905
        %v931 = vpack.c.bf16 %v922, %v922
        %v932 = vpack.c.bf16 %v925, %v925
        %v933 = vpack.c.bf16 %v928, %v928
        %935 = vrot.lane.b32.xlu0 %v876, 120
        %v936 = vpop.permute.xlu0 %935
        %938 = vrot.lane.b32.xlu0 %v876, 112
        %v939 = vpop.permute.xlu0 %938
        %941 = vrot.lane.b32.xlu0 %v876, 104
        %v942 = vpop.permute.xlu0 %941
        %v944 = vpack.c.bf16 %v876, %v876
        %v945 = vpack.c.bf16 %v936, %v936
        %v946 = vpack.c.bf16 %v939, %v939
        %v947 = vpack.c.bf16 %v942, %v942
        %v949 = vunpack.c.l.b16 %v930
        %v950 = vpack.c.b16 %v949, %v949
        %951 = vrot.lane.b32.xlu0 %v950, 64
        %v952 = vpop.permute.xlu0 %951
        %vm953 = vcmask 64512
        %v955 = vsel %vm953, %v916, 0
        %v958 = vsel %vm953, %v952, 0
        %960 = vmatpush.bf16.xpose.msra.mxu0 0
        %961 = vmatpush.bf16.xpose.msra.mxu0 0
        %962 = vmatpush.bf16.xpose.msra.mxu0 0
        %963 = vmatpush.bf16.xpose.msra.mxu0 0
        %964 = vmatpush.bf16.xpose.msra.mxu0 0
        %965 = vmatpush.bf16.xpose.msra.mxu0 0
        %966 = vmatpush.bf16.xpose.msra.mxu0 0
        %967 = vmatpush.bf16.xpose.msra.mxu0 %v958
        %968 = vmatmul.bf16.gmra.mxu0 %v955
        %v969 = vpop.f32.mrf.mxu0
        %v970 = vadd.f32 0.0, %v969
        %v971 = vpop.f32.mrf.mxu0
        %972 = vdwg.mxu0
        %v974 = vunpack.c.l.b16 %v931
        %v975 = vpack.c.b16 %v974, %v974
        %976 = vrot.lane.b32.xlu0 %v975, 64
        %v977 = vpop.permute.xlu0 %976
        %v979 = vsel %vm953, %v917, 0
        %v982 = vsel %vm953, %v977, 0
        %984 = vmatpush.bf16.xpose.msra.mxu0 0
        %985 = vmatpush.bf16.xpose.msra.mxu0 0
        %986 = vmatpush.bf16.xpose.msra.mxu0 0
        %987 = vmatpush.bf16.xpose.msra.mxu0 0
        %988 = vmatpush.bf16.xpose.msra.mxu0 0
        %989 = vmatpush.bf16.xpose.msra.mxu0 0
        %990 = vmatpush.bf16.xpose.msra.mxu0 0
        %991 = vmatpush.bf16.xpose.msra.mxu0 %v982
        %992 = vmatmul.bf16.gmra.mxu0 %v979
        %v993 = vpop.f32.mrf.mxu0
        %v994 = vadd.f32 0.0, %v993
        %v995 = vpop.f32.mrf.mxu0
        %996 = vdwg.mxu0
        %v998 = vunpack.c.l.b16 %v932
        %v999 = vpack.c.b16 %v998, %v998
        %1000 = vrot.lane.b32.xlu0 %v999, 64
        %v1001 = vpop.permute.xlu0 %1000
        %v1003 = vsel %vm953, %v918, 0
        %v1006 = vsel %vm953, %v1001, 0
        %1008 = vmatpush.bf16.xpose.msra.mxu0 0
        %1009 = vmatpush.bf16.xpose.msra.mxu0 0
        %1010 = vmatpush.bf16.xpose.msra.mxu0 0
        %1011 = vmatpush.bf16.xpose.msra.mxu0 0
        %1012 = vmatpush.bf16.xpose.msra.mxu0 0
        %1013 = vmatpush.bf16.xpose.msra.mxu0 0
        %1014 = vmatpush.bf16.xpose.msra.mxu0 0
        %1015 = vmatpush.bf16.xpose.msra.mxu0 %v1006
        %1016 = vmatmul.bf16.gmra.mxu0 %v1003
        %v1017 = vpop.f32.mrf.mxu0
        %v1018 = vadd.f32 0.0, %v1017
        %v1019 = vpop.f32.mrf.mxu0
        %1020 = vdwg.mxu0
        %v1022 = vunpack.c.l.b16 %v933
        %v1023 = vpack.c.b16 %v1022, %v1022
        %1024 = vrot.lane.b32.xlu0 %v1023, 64
        %v1025 = vpop.permute.xlu0 %1024
        %v1027 = vsel %vm953, %v919, 0
        %v1030 = vsel %vm953, %v1025, 0
        %1032 = vmatpush.bf16.xpose.msra.mxu0 0
        %1033 = vmatpush.bf16.xpose.msra.mxu0 0
        %1034 = vmatpush.bf16.xpose.msra.mxu0 0
        %1035 = vmatpush.bf16.xpose.msra.mxu0 0
        %1036 = vmatpush.bf16.xpose.msra.mxu0 0
        %1037 = vmatpush.bf16.xpose.msra.mxu0 0
        %1038 = vmatpush.bf16.xpose.msra.mxu0 0
        %1039 = vmatpush.bf16.xpose.msra.mxu0 %v1030
        %1040 = vmatmul.bf16.gmra.mxu0 %v1027
        %v1041 = vpop.f32.mrf.mxu0
        %v1042 = vadd.f32 0.0, %v1041
        %v1043 = vpop.f32.mrf.mxu0
        %1044 = vdwg.mxu0
        %v1045 = vsel %vm953, %v970, -inf
        %1046 = vmax.xlane.f32.xlu0 %v1045
        %v1047 = vpop.xlane.xlu0 %1046
        %v1048 = vsel %vm953, %v994, -inf
        %1049 = vmax.xlane.f32.xlu0 %v1048
        %v1050 = vpop.xlane.xlu0 %1049
        %v1051 = vsel %vm953, %v1018, -inf
        %1052 = vmax.xlane.f32.xlu0 %v1051
        %v1053 = vpop.xlane.xlu0 %1052
        %v1054 = vsel %vm953, %v1042, -inf
        %1055 = vmax.xlane.f32.xlu0 %v1054
        %v1056 = vpop.xlane.xlu0 %1055
        %v1057 = vsub.f32 %v970, %v1047
        %v1058 = vsub.f32 %v994, %v1050
        %v1059 = vsub.f32 %v1018, %v1053
        %v1060 = vsub.f32 %v1042, %v1056
        %v1061 = vmul.f32 %v1057, 1.442695
        %v1062 = vpow.pop %v1061
        %v1063 = vmul.f32 %v1058, 1.442695
        %v1064 = vpow.pop %v1063
        %v1065 = vmul.f32 %v1059, 1.442695
        %v1066 = vpow.pop %v1065
        %v1067 = vmul.f32 %v1060, 1.442695
        %v1068 = vpow.pop %v1067
        %v1069 = vsel %vm953, %v1062, 0.0
        %1070 = vadd.xlane.f32.xlu0 %v1069
        %v1071 = vpop.xlane.xlu0 %1070
        %v1072 = vsel %vm953, %v1064, 0.0
        %1073 = vadd.xlane.f32.xlu0 %v1072
        %v1074 = vpop.xlane.xlu0 %1073
        %v1075 = vsel %vm953, %v1066, 0.0
        %1076 = vadd.xlane.f32.xlu0 %v1075
        %v1077 = vpop.xlane.xlu0 %1076
        %v1078 = vsel %vm953, %v1068, 0.0
        %1079 = vadd.xlane.f32.xlu0 %v1078
        %v1080 = vpop.xlane.xlu0 %1079
        %v1081 = vrcp.pop %v1071
        %v1082 = vrcp.pop %v1074
        %v1083 = vrcp.pop %v1077
        %v1084 = vrcp.pop %v1080
        %v1085 = vmul.f32 %v1062, %v1081
        %v1086 = vmul.f32 %v1064, %v1082
        %v1087 = vmul.f32 %v1066, %v1083
        %v1088 = vmul.f32 %v1068, %v1084
        %v1089 = vpack.c.bf16 %v1085, %v1085
        %v1090 = vpack.c.bf16 %v1086, %v1086
        %v1091 = vpack.c.bf16 %v1087, %v1087
        %v1092 = vpack.c.bf16 %v1088, %v1088
        %v1094 = vsel %vm953, %v1089, 0
        %vm1096 = vcmask 1043456
        %v1098 = vsel %vm1096, %v944, 0
        %1100 = vmatpush.bf16.msra.mxu0 0
        %1101 = vmatpush.bf16.msra.mxu0 0
        %1102 = vmatpush.bf16.msra.mxu0 0
        %1103 = vmatpush.bf16.msra.mxu0 0
        %1104 = vmatpush.bf16.msra.mxu0 0
        %1105 = vmatpush.bf16.msra.mxu0 0
        %1106 = vmatpush.bf16.msra.mxu0 0
        %1107 = vmatpush.bf16.msra.mxu0 %v1098
        %1108 = vmatmul.bf16.gmra.mxu0 %v1094
        %v1109 = vpop.f32.mrf.mxu0
        %v1110 = vadd.f32 0.0, %v1109
        %v1111 = vpop.f32.mrf.mxu0
        %1112 = vdwg.mxu0
        %v1114 = vsel %vm953, %v1090, 0
        %v1117 = vsel %vm1096, %v945, 0
        %1119 = vmatpush.bf16.msra.mxu0 0
        %1120 = vmatpush.bf16.msra.mxu0 0
        %1121 = vmatpush.bf16.msra.mxu0 0
        %1122 = vmatpush.bf16.msra.mxu0 0
        %1123 = vmatpush.bf16.msra.mxu0 0
        %1124 = vmatpush.bf16.msra.mxu0 0
        %1125 = vmatpush.bf16.msra.mxu0 0
        %1126 = vmatpush.bf16.msra.mxu0 %v1117
        %1127 = vmatmul.bf16.gmra.mxu0 %v1114
        %v1128 = vpop.f32.mrf.mxu0
        %v1129 = vadd.f32 0.0, %v1128
        %v1130 = vpop.f32.mrf.mxu0
        %1131 = vdwg.mxu0
        %v1133 = vsel %vm953, %v1091, 0
        %v1136 = vsel %vm1096, %v946, 0
        %1138 = vmatpush.bf16.msra.mxu0 0
        %1139 = vmatpush.bf16.msra.mxu0 0
        %1140 = vmatpush.bf16.msra.mxu0 0
        %1141 = vmatpush.bf16.msra.mxu0 0
        %1142 = vmatpush.bf16.msra.mxu0 0
        %1143 = vmatpush.bf16.msra.mxu0 0
        %1144 = vmatpush.bf16.msra.mxu0 0
        %1145 = vmatpush.bf16.msra.mxu0 %v1136
        %1146 = vmatmul.bf16.gmra.mxu0 %v1133
        %v1147 = vpop.f32.mrf.mxu0
        %v1148 = vadd.f32 0.0, %v1147
        %v1149 = vpop.f32.mrf.mxu0
        %1150 = vdwg.mxu0
        %v1152 = vsel %vm953, %v1092, 0
        %v1155 = vsel %vm1096, %v947, 0
        %1157 = vmatpush.bf16.msra.mxu0 0
        %1158 = vmatpush.bf16.msra.mxu0 0
        %1159 = vmatpush.bf16.msra.mxu0 0
        %1160 = vmatpush.bf16.msra.mxu0 0
        %1161 = vmatpush.bf16.msra.mxu0 0
        %1162 = vmatpush.bf16.msra.mxu0 0
        %1163 = vmatpush.bf16.msra.mxu0 0
        %1164 = vmatpush.bf16.msra.mxu0 %v1155
        %1165 = vmatmul.bf16.gmra.mxu0 %v1152
        %v1166 = vpop.f32.mrf.mxu0
        %v1167 = vadd.f32 0.0, %v1166
        %v1168 = vpop.f32.mrf.mxu0
        %1169 = vdwg.mxu0
        %1171 = vrot.lane.b32.xlu0 %v1129, 8
        %v1172 = vpop.permute.xlu0 %1171
        %1175 = vrot.lane.b32.xlu0 %v1148, 16
        %v1176 = vpop.permute.xlu0 %1175
        %1179 = vrot.lane.b32.xlu0 %v1167, 24
        %v1180 = vpop.permute.xlu0 %1179
        %v1182 = vsel %vm953, %v1110, %v1172
        %vm1183 = vcmask 130048
        %v1184 = vsel %vm1183, %v1182, %v1176
        %vm1185 = vcmask 195584
        %v1186 = vsel %vm1185, %v1184, %v1180
        %v1187 = vpack.c.bf16 %v1186, %v1186
        %v1188 = vld [vmem:[%s785] sm:$0xf]
        %v1189 = vld [vmem:[%s785 + $0x4] sm:$0xf]
        %v1190 = vld [vmem:[%s785 + $0x8] sm:$0xf]
        %v1191 = vld [vmem:[%s785 + $0xc] sm:$0xf]
        %v1192 = vld [vmem:[%s788] sm:$0x1]
        %v1194 = vperm.slane %v1192, 0
        %v1200 = vunpack.c.l.b16 %v1188
        %v1201 = vunpack.c.l.b16 %v1189
        %v1202 = vunpack.c.l.b16 %v1190
        %v1203 = vunpack.c.l.b16 %v1191
        %v1204 = vpack.c.b16 %v1201, %v1200
        %v1205 = vpack.c.b16 %v1203, %v1202
        %v1209 = vsel %vm849, %v1187, 0
        %1211 = vmatpush.bf16.msra.mxu0 0
        %1212 = vmatpush.bf16.msra.mxu0 0
        %1213 = vmatpush.bf16.msra.mxu0 0
        %1214 = vmatpush.bf16.msra.mxu0 0
        %1215 = vmatpush.bf16.msra.mxu0 0
        %1216 = vmatpush.bf16.msra.mxu0 0
        %1217 = vmatpush.bf16.msra.mxu0 %v1205
        %1218 = vmatpush.bf16.msra.mxu0 %v1204
        %1219 = vmatmul.bf16.gmra.mxu0 %v1209
        %v1220 = vpop.f32.mrf.mxu0
        %v1221 = vadd.f32 %v1194, %v1220
        %v1222 = vpop.f32.mrf.mxu0
        %1223 = vdwg.mxu0
        %v1224 = vadd.f32 %v817, %v1221
        %v1225 = vld [vmem:[%s802] sm:$0x1]
        %v1226 = vld [vmem:[%s805] sm:$0x1]
        %v1227 = vsel %vm849, %v1224, 0.0
        %1228 = vadd.xlane.f32.xlu0 %v1227
        %v1229 = vpop.xlane.xlu0 %1228
        %v1230 = vrcp.pop 32.0
        %v1231 = vmul.f32 32.0, %v1230
        %v1232 = vsub.f32 1.0, %v1231
        %v1233 = vmul.f32 %v1230, %v1232
        %v1234 = vadd.f32 %v1230, %v1233
        %vm1235 = vweird.f32 %v1230
        %v1236 = vsel %vm1235, %v1230, %v1234
        %v1237 = vmul.f32 %v1229, %v1236
        %v1238 = vsub.f32 %v1224, %v1237
        %v1239 = vmul.f32 %v1238, %v1238
        %v1240 = vsel %vm849, %v1239, 0.0
        %1241 = vadd.xlane.f32.xlu0 %v1240
        %v1242 = vpop.xlane.xlu0 %1241
        %v1243 = vmul.f32 %v1242, %v1236
        %v1244 = vadd.f32 %v1243, 1e-05
        %v1245 = vrsqrt.pop %v1244
        %v1246 = vmul.f32 %v1245, %v1244
        %v1247 = vmul.f32 %v1246, %v1245
        %v1248 = vmul.f32 0.5, %v1247
        %v1249 = vsub.f32 1.5, %v1248
        %v1250 = vmul.f32 %v1245, %v1249
        %vm1251 = vweird.f32 %v1244
        %vm1252 = vweird.f32 %v1245
        %vm1253 = vmor %vm1251, %vm1252
        %v1254 = vsel %vm1253, %v1245, %v1250
        %v1255 = vmul.f32 %v1238, %v1254
        %v1257 = vperm.slane %v1225, 0
        %v1259 = vmul.f32 %v1255, %v1257
        %v1261 = vperm.slane %v1226, 0
        %v1263 = vadd.f32 %v1259, %v1261
        %v1264 = vpack.c.bf16 %v1263, %v1263
        %v1265 = vld [vmem:[%s673] sm:$0xf]
        %v1266 = vld [vmem:[%s673 + $0x4] sm:$0xf]
        %v1267 = vld [vmem:[%s673 + $0x8] sm:$0xf]
        %v1268 = vld [vmem:[%s673 + $0xc] sm:$0xf]
        %v1269 = vld [vmem:[%s791] sm:$0x1]
        %v1271 = vperm.slane %v1269, 0
        %v1277 = vunpack.c.l.b16 %v1265
        %v1278 = vunpack.c.l.b16 %v1266
        %v1279 = vunpack.c.l.b16 %v1267
        %v1280 = vunpack.c.l.b16 %v1268
        %v1281 = vpack.c.b16 %v1278, %v1277
        %v1282 = vpack.c.b16 %v1280, %v1279
        %v1286 = vsel %vm849, %v1264, 0
        %1288 = vmatpush.bf16.msra.mxu0 0
        %1289 = vmatpush.bf16.msra.mxu0 0
        %1290 = vmatpush.bf16.msra.mxu0 0
        %1291 = vmatpush.bf16.msra.mxu0 0
        %1292 = vmatpush.bf16.msra.mxu0 0
        %1293 = vmatpush.bf16.msra.mxu0 0
        %1294 = vmatpush.bf16.msra.mxu0 %v1282
        %1295 = vmatpush.bf16.msra.mxu0 %v1281
        %1296 = vmatmul.bf16.gmra.mxu0 %v1286
        %v1297 = vpop.f32.mrf.mxu0
        %v1298 = vadd.f32 %v1271, %v1297
        %v1299 = vpop.f32.mrf.mxu0
        %1300 = vdwg.mxu0
        %v1301 = vmax.f32 %v1298, 0.0
        %v1302 = vpack.c.bf16 %v1301, %v1301
        %v1303 = vld [vmem:[%s796] sm:$0xf]
        %v1304 = vld [vmem:[%s796 + $0x4] sm:$0xf]
        %v1305 = vld [vmem:[%s796 + $0x8] sm:$0xf]
        %v1306 = vld [vmem:[%s796 + $0xc] sm:$0xf]
        %v1307 = vld [vmem:[%s796 + $0x10] sm:$0xf]
        %v1308 = vld [vmem:[%s796 + $0x14] sm:$0xf]
        %v1309 = vld [vmem:[%s796 + $0x18] sm:$0xf]
        %v1310 = vld [vmem:[%s796 + $0x1c] sm:$0xf]
        %v1311 = vld [vmem:[%s799] sm:$0x1]
        %v1313 = vperm.slane %v1311, 0
        %v1323 = vunpack.c.l.b16 %v1303
        %v1324 = vunpack.c.l.b16 %v1304
        %v1325 = vunpack.c.l.b16 %v1305
        %v1326 = vunpack.c.l.b16 %v1306
        %v1327 = vunpack.c.l.b16 %v1307
        %v1328 = vunpack.c.l.b16 %v1308
        %v1329 = vunpack.c.l.b16 %v1309
        %v1330 = vunpack.c.l.b16 %v1310
        %v1331 = vpack.c.b16 %v1324, %v1323
        %v1332 = vpack.c.b16 %v1326, %v1325
        %v1333 = vpack.c.b16 %v1328, %v1327
        %v1334 = vpack.c.b16 %v1330, %v1329
        %vm1339 = vcmask 523264
        %v1341 = vsel %vm1339, %v1302, 0
        %1343 = vmatpush.bf16.msra.mxu0 0
        %1344 = vmatpush.bf16.msra.mxu0 0
        %1345 = vmatpush.bf16.msra.mxu0 0
        %1346 = vmatpush.bf16.msra.mxu0 0
        %1347 = vmatpush.bf16.msra.mxu0 %v1334
        %1348 = vmatpush.bf16.msra.mxu0 %v1333
        %1349 = vmatpush.bf16.msra.mxu0 %v1332
        %1350 = vmatpush.bf16.msra.mxu0 %v1331
        %1351 = vmatmul.bf16.gmra.mxu0 %v1341
        %v1352 = vpop.f32.mrf.mxu0
        %v1353 = vadd.f32 %v1313, %v1352
        %v1354 = vpop.f32.mrf.mxu0
        %1355 = vdwg.mxu0
        %v1356 = vadd.f32 %v1263, %v1353
        %v1357 = vld [vmem:[%s682] sm:$0x1]
        %v1358 = vld [vmem:[%s808] sm:$0x1]
        %v1359 = vsel %vm849, %v1356, 0.0
        %1360 = vadd.xlane.f32.xlu0 %v1359
        %v1361 = vpop.xlane.xlu0 %1360
        %v1362 = vmul.f32 %v1361, %v1236
        %v1363 = vsub.f32 %v1356, %v1362
        %v1364 = vmul.f32 %v1363, %v1363
        %v1365 = vsel %vm849, %v1364, 0.0
        %1366 = vadd.xlane.f32.xlu0 %v1365
        %v1367 = vpop.xlane.xlu0 %1366
        %v1368 = vmul.f32 %v1367, %v1236
        %v1369 = vadd.f32 %v1368, 1e-05
        %v1370 = vrsqrt.pop %v1369
        %v1371 = vmul.f32 %v1370, %v1369
        %v1372 = vmul.f32 %v1371, %v1370
        %v1373 = vmul.f32 0.5, %v1372
        %v1374 = vsub.f32 1.5, %v1373
        %v1375 = vmul.f32 %v1370, %v1374
        %vm1376 = vweird.f32 %v1369
        %vm1377 = vweird.f32 %v1370
        %vm1378 = vmor %vm1376, %vm1377
        %v1379 = vsel %vm1378, %v1370, %v1375
        %v1380 = vmul.f32 %v1363, %v1379
        %v1382 = vperm.slane %v1357, 0
        %v1384 = vmul.f32 %v1380, %v1382
        %v1386 = vperm.slane %v1358, 0
        %v1388 = vadd.f32 %v1384, %v1386
        %1389 = vst.msk [vmem:[#allocation2] sm:$0xff] %vm849, %v1388
        %p1390 = scmp.eq.s32.totalorder %s44, 1
        // Predicated region
        $region109: #{tpu_custom_call.1} parent=79 // pred_check
          %p1391 = pneg %p1390
        $region110: #{tpu_custom_call.1} parent=79 // pred_check_branch
          %1393 = sbr.rel (%p1391) target = $region112
        $region111: #{tpu_custom_call.1} parent=79 // pred_region
          %v1394 = vsel %vm849, %v1388, 0.0
          %v1395 = vrot.slane %v1394, 4
          %v1396 = vadd.f32 %v1394, %v1395
          %v1397 = vrot.slane %v1396, 2
          %v1398 = vadd.f32 %v1396, %v1397
          %v1399 = vrot.slane %v1398, 1
          %v1400 = vadd.f32 %v1398, %v1399
          %v1401 = vrcp.pop 8.0
          %v1402 = vmul.f32 8.0, %v1401
          %v1403 = vsub.f32 1.0, %v1402
          %v1404 = vmul.f32 %v1401, %v1403
          %v1405 = vadd.f32 %v1401, %v1404
          %vm1406 = vweird.f32 %v1401
          %v1407 = vsel %vm1406, %v1401, %v1405
          %v1408 = vmul.f32 %v1400, %v1407
          %vm1409 = vcmask 253952
          %1410 = vst.msk [vmem:[%s775] sm:$0x1] %vm1409, %v1408
        $region112: #{tpu_custom_call.1} parent=79 // pred_fallthru
          _
        %s1411 = sand.u32 %s439, 1
        %s1412 = scalar_lea.sflag [#allocation5], %s1411
        %s1413 = sand.u32 %s439, 1
        %s1414 = scalar_lea.vmem [#allocation14], %s1413
        // Predicated region
        $region113: #{tpu_custom_call.1} parent=79 // pred_check
          %p1415 = pneg %p449
        $region114: #{tpu_custom_call.1} parent=79 // pred_check_branch
          %1417 = sbr.rel (%p1415) target = $region116
        $region115: #{tpu_custom_call.1} parent=79 // pred_region
          %1419 = vsyncadd %s1412, 0
          %s1420 = scalar_lea.hbm %s15, %s43
          %s1422 = sshll.u32 %s1414, 4
          %s1423 = int_to_ptr.vmem [resolvable:$true] %s1422
          %s1424 = sshll.u32 %s1420, 4
          %s1425 = int_to_ptr.hbm [resolvable:$true] %s1424
          %1427 = dma.vmem_to_hbm [thread:$0]  %s1423, 16, %s1425, %s1412
        $region116: #{tpu_custom_call.1} parent=79 // pred_fallthru
          _
      $region80: #{tpu_custom_call.1} parent=5 // pred_fallthru
        _
      %p1428 = scmp.le.s32.totalorder 2, %s34
      // Predicated region
      $region117: #{tpu_custom_call.1} parent=5 // pred_check
        %p1429 = pneg %p1428
      $region118: #{tpu_custom_call.1} parent=5 // pred_check_branch
        %1431 = sbr.rel (%p1429) target = $region120
      $region119: #{tpu_custom_call.1} parent=5 // pred_region
        %s1432 = ssub.s32 %s34, 2
        // Predicated region
        $region121: #{tpu_custom_call.1} parent=119 // pred_check
          %p1433 = pneg %p455
        $region122: #{tpu_custom_call.1} parent=119 // pred_check_branch
          %1435 = sbr.rel (%p1433) target = $region124
        $region123: #{tpu_custom_call.1} parent=119 // pred_region
          %s1436 = sand.u32 %s440, 1
          %s1437 = scalar_lea.sflag [#allocation5], %s1436
          %s1438 = sand.u32 %s440, 1
          %s1439 = scalar_lea.vmem [#allocation14], %s1438
          %1441 = dma.done %s1437, 16
        $region124: #{tpu_custom_call.1} parent=119 // pred_fallthru
          _
      $region120: #{tpu_custom_call.1} parent=5 // pred_fallthru
        _
    $region6: #{tpu_custom_call.1} parent=1 // loop_footer
      %s38 = sadd.s32 1, %s34
    $region7: #{tpu_custom_call.1} parent=1 // loop_footer_branch
      %33 = sbr.rel target = $region3
    $region8: #{tpu_custom_call.1} parent=1 // loop_exit
      _
    %1442 = vsyncpa [#allocation4], 1
    %s1443 = scalar_lea.sflag [#allocation4], 1
    %1444 = vsyncpa %s1443, 1
    %1445 = vsyncpa [#allocation7], 1
    %1446 = vsyncpa [#allocation10], 1
    %s1447 = scalar_lea.sflag [#allocation10], 1
    %1448 = vsyncpa %s1447, 1
    %1449 = vsyncpa [#allocation13], 1
    %s1450 = scalar_lea.sflag [#allocation13], 1
    %1451 = vsyncpa %s1450, 1
    %1452 = vsyncpa [#allocation5], 1
    %s1453 = scalar_lea.sflag [#allocation5], 1
    %1454 = vsyncpa %s1453, 1

</llo_original>
